<compile_context>
chip_gen: v6e
topology: v6e:2x2x1
jax: 0.10.0
libtpu: 0.0.40
codegen_flags: <defaults>
</compile_context>

<pallas_src>
import math
import jax
import jax.numpy as jnp
from jax.experimental import pallas as pl
from jax.experimental.pallas import tpu as pltpu

DIM = 32          # d_model
NUM_HEADS = 4
HEAD_DIM = DIM // NUM_HEADS
LN_EPS = 1e-5     # nn.LayerNorm default eps


def transformer_layer_kernel(x_ref, wqkv_ref, bqkv_ref, wo_ref, w12_ref,
                             vecs_ref, o_ref):
    """Processes one block of TB batch elements fully fused.

    Shapes (block / full-operand views seen by the kernel):
      x_ref    : (TB, S, D)
      wqkv_ref : (3, N, D, hd)   N = TB*H, n = b*H + h   (q, k, v stacks)
      bqkv_ref : (3, N, 1, hd)
      wo_ref   : (N, hd, D)
      w12_ref  : (2, D, D)       FFN weights (already transposed to (in, out))
      vecs_ref : (8, D)          packed bias / LayerNorm vectors
    """
    TB, S, D = x_ref.shape
    H = NUM_HEADS
    hd = D // H
    N = TB * H
    M = TB * S

    x3 = x_ref[...]                      # (TB, S, D)
    x2 = x3.reshape(M, D)                # leading-dim merge only (safe)

    # ---- unpack the small packed vectors (static sublane row slices) ----
    vecs = vecs_ref[...]                 # (8, D)
    bo, g1, be1 = vecs[0:1, :], vecs[1:2, :], vecs[2:3, :]
    b1, b2 = vecs[3:4, :], vecs[4:5, :]
    g2, be2 = vecs[5:6, :], vecs[6:7, :]

    # ---- QKV projection, head-batched (no lane slicing, no stacks) ----
    # Replicate each batch element across the H heads along the leading axis
    # so q/k/v come out directly as (N, S, hd) with n = b*H + h.
    xb = jnp.broadcast_to(x3[:, None], (TB, H, S, D)).reshape(N, S, D)
    q = jnp.einsum('nsd,nde->nse', xb, wqkv_ref[0],
                   preferred_element_type=jnp.float32) + bqkv_ref[0]
    k = jnp.einsum('nsd,nde->nse', xb, wqkv_ref[1],
                   preferred_element_type=jnp.float32) + bqkv_ref[1]
    v = jnp.einsum('nsd,nde->nse', xb, wqkv_ref[2],
                   preferred_element_type=jnp.float32) + bqkv_ref[2]

    # ---- attention: single leading-batch rank-3 einsums over N = TB*H ----
    # (1/sqrt(head_dim) scale was folded into W_q / b_q in prepare_params.)
    s = jnp.einsum('nqd,nkd->nqk', q, k, preferred_element_type=jnp.float32)
    s = s - jnp.max(s, axis=-1, keepdims=True)
    p = jnp.exp(s)
    p = p / jnp.sum(p, axis=-1, keepdims=True)    # exact divide (approx recip failed tol)
    ctx = jnp.einsum('nqk,nkd->nqd', p, v, preferred_element_type=jnp.float32)

    # ---- output projection: one batched contraction + head reduction ----
    proj = jnp.einsum('nse,ned->nsd', ctx, wo_ref[...],
                      preferred_element_type=jnp.float32)       # (N, S, D)
    attn = jnp.sum(proj.reshape(TB, H, S, D), axis=1).reshape(M, D) + bo

    # ---- residual + LayerNorm1 (dropout == identity at inference) ----
    h1 = attn + x2
    mu1 = jnp.mean(h1, axis=-1, keepdims=True)
    var1 = jnp.mean(jnp.square(h1 - mu1), axis=-1, keepdims=True)
    h1n = (h1 - mu1) * jax.lax.rsqrt(var1 + LN_EPS) * g1 + be1

    # ---- up_sample_forward: Linear -> ReLU -> Linear ----
    f = jnp.dot(h1n, w12_ref[0], preferred_element_type=jnp.float32) + b1
    f = jnp.maximum(f, 0.0)
    f = jnp.dot(f, w12_ref[1], preferred_element_type=jnp.float32) + b2

    # ---- residual with ORIGINAL input + LayerNorm2 ----
    h2 = x2 + f
    mu2 = jnp.mean(h2, axis=-1, keepdims=True)
    var2 = jnp.mean(jnp.square(h2 - mu2), axis=-1, keepdims=True)
    out = (h2 - mu2) * jax.lax.rsqrt(var2 + LN_EPS) * g2 + be2

    o_ref[...] = out.reshape(TB, S, D)


def prepare_params(params):
    """One-time parameter preparation (outside the jitted forward).

    * Splits the in-projection into head-major (H, D, hd) q/k/v weight stacks
      (and (H, 1, hd) biases) with the 1/sqrt(head_dim) scale folded into the
      Q weight and bias — this removes all in-kernel lane slicing.
    * Splits the out-projection into a head-major (H, hd, D) stack.
    * Transposes the FFN weights to (in, out) and stacks them (2, D, D).
    * Packs all seven (D,) vectors into a single (8, D) operand.
    """
    D, H, hd = DIM, NUM_HEADS, HEAD_DIM
    scale = 1.0 / math.sqrt(hd)

    w_in = jnp.asarray(params['in_proj_w'])            # (3D, D)  PyTorch (out, in)
    b_in = jnp.asarray(params['in_proj_b'])            # (3D,)
    wq_t = w_in[:D].T * scale                          # (D, D), scale folded
    wk_t = w_in[D:2 * D].T
    wv_t = w_in[2 * D:].T
    bq = b_in[:D] * scale
    bk = b_in[D:2 * D]
    bv = b_in[2 * D:]

    def per_head_w(w):      # (D, D) with columns grouped by head -> (H, D, hd)
        return w.reshape(D, H, hd).transpose(1, 0, 2)

    def per_head_b(b):      # (D,) -> (H, 1, hd)
        return b.reshape(H, 1, hd)

    wqkv_h = jnp.stack([per_head_w(wq_t), per_head_w(wk_t), per_head_w(wv_t)])  # (3,H,D,hd)
    bqkv_h = jnp.stack([per_head_b(bq), per_head_b(bk), per_head_b(bv)])        # (3,H,1,hd)

    wo_t = jnp.asarray(params['out_proj_w']).T          # (D, D), rows grouped by head
    wo_h = wo_t.reshape(H, hd, D)                       # (H, hd, D)

    w12 = jnp.stack([jnp.asarray(params['w1']).T,
                     jnp.asarray(params['w2']).T])      # (2, D, D)

    vecs = jnp.stack([
        jnp.asarray(params['out_proj_b']),   # 0: out-proj bias
        jnp.asarray(params['ln1_g']),        # 1: LN1 gamma
        jnp.asarray(params['ln1_b']),        # 2: LN1 beta
        jnp.asarray(params['b1']),           # 3: FFN bias 1
        jnp.asarray(params['b2']),           # 4: FFN bias 2
        jnp.asarray(params['ln2_g']),        # 5: LN2 gamma
        jnp.asarray(params['ln2_b']),        # 6: LN2 beta
        jnp.zeros((D,), jnp.float32),        # 7: pad to a full sublane tile
    ])                                       # (8, D)

    return {'wqkv_h': wqkv_h, 'bqkv_h': bqkv_h, 'wo_h': wo_h,
            'w12': w12, 'vecs': vecs}


def _choose_tb(B, S, target_rows=256):
    """Batch-block size: aim for TB*S >= 256 rows per matmul (MXU fill on
    v6e/v7x; >=128 already saturates v5e), but keep >= 2 grid steps when
    B >= 2 so the parallel axis can shard across v7x's two TensorCores."""
    tb = max(1, min(B, pl.cdiv(target_rows, S)))
    if B >= 2:
        tb = min(tb, max(1, B // 2))
    while B % tb:            # shrink to a divisor of B (avoid padded blocks)
        tb -= 1
    return tb


def transformer_layer(x_sbd, prep):
    """x_sbd: (S, B, D) float32 — PyTorch (batch_first=False) convention."""
    # Batch-major layout so the grid can block/shard batches.
    # TODO(synk): accept batch-first activations upstream to drop the transposes.
    x = jnp.transpose(x_sbd, (1, 0, 2))        # (B, S, D)
    B, S, D = x.shape
    H, hd = NUM_HEADS, HEAD_DIM

    TB = _choose_tb(B, S)
    N = TB * H
    grid = (B // TB,)

    # Tile the per-head weights across the TB batch elements of a block
    # (n = b*H + h) so the kernel's attention einsums stay leading-batch
    # rank-3.  Plain XLA, once per call, outside the kernel loop.
    wqkv_n = jnp.broadcast_to(prep['wqkv_h'][:, None],
                              (3, TB) + prep['wqkv_h'].shape[1:]).reshape(3, N, D, hd)
    bqkv_n = jnp.broadcast_to(prep['bqkv_h'][:, None],
                              (3, TB) + prep['bqkv_h'].shape[1:]).reshape(3, N, 1, hd)
    wo_n = jnp.broadcast_to(prep['wo_h'][None],
                            (TB,) + prep['wo_h'].shape).reshape(N, hd, D)

    def full(shape):
        nd = len(shape)
        return pl.BlockSpec(shape, lambda b, nd=nd: (0,) * nd)

    out = pl.pallas_call(
        transformer_layer_kernel,
        out_shape=jax.ShapeDtypeStruct((B, S, D), jnp.float32),
        grid=grid,
        in_specs=[
            pl.BlockSpec((TB, S, D), lambda b: (b, 0, 0)),   # x (per-block batch slab)
            full((3, N, D, hd)),                             # q/k/v weights
            full((3, N, 1, hd)),                             # q/k/v biases
            full((N, hd, D)),                                # out-proj weight (per head)
            full((2, D, D)),                                 # FFN weights
            full((8, D)),                                    # packed bias/LN vectors
        ],
        out_specs=pl.BlockSpec((TB, S, D), lambda b: (b, 0, 0)),
        compiler_params=pltpu.CompilerParams(
            dimension_semantics=("parallel",),
            # Working set is ~O(100 KB) at these sizes: well under the 32 MiB
            # scoped default and v7x's 64 MiB physical VMEM.
            vmem_limit_bytes=32 * 1024 * 1024),
    )(x, wqkv_n, bqkv_n, wo_n, prep['w12'], prep['vecs'])
    return jnp.transpose(out, (1, 0, 2))       # back to (S, B, D)


def reference(x_sbd, params):
    """Pure-JAX reference implementing the same PyTorch forward (eval mode)."""
    S, B, D = x_sbd.shape
    H, hd = NUM_HEADS, HEAD_DIM
    x = x_sbd.reshape(S * B, D)
    qkv = x @ params['in_proj_w'].T + params['in_proj_b']
    q, k, v = qkv[:, :D], qkv[:, D:2 * D], qkv[:, 2 * D:]
    q = (q.reshape(S, B, H, hd) / math.sqrt(hd)).transpose(1, 2, 0, 3)  # (B,H,S,hd)
    k = k.reshape(S, B, H, hd).transpose(1, 2, 0, 3)
    v = v.reshape(S, B, H, hd).transpose(1, 2, 0, 3)
    s = jnp.einsum('bhqd,bhkd->bhqk', q, k)
    p = jax.nn.softmax(s, axis=-1)
    ctx = jnp.einsum('bhqk,bhkd->bhqd', p, v)              # (B,H,S,hd)
    ctx = ctx.transpose(2, 0, 1, 3).reshape(S * B, D)      # (S,B,H,hd) -> (S*B, D)
    attn = ctx @ params['out_proj_w'].T + params['out_proj_b']

    def ln(z, g, b):
        mu = z.mean(-1, keepdims=True)
        var = ((z - mu) ** 2).mean(-1, keepdims=True)
        return (z - mu) / jnp.sqrt(var + LN_EPS) * g + b

    h1 = ln(attn + x, params['ln1_g'], params['ln1_b'])
    f = jnp.maximum(h1 @ params['w1'].T + params['b1'], 0.0)
    f = f @ params['w2'].T + params['b2']
    out = ln(x + f, params['ln2_g'], params['ln2_b'])
    return out.reshape(S, B, D)


if __name__ == "__main__":
    key = jax.random.PRNGKey(0)
    ks = jax.random.split(key, 9)
    S, B, D = 8, 2, DIM

    x = jax.random.normal(ks[0], (S, B, D), jnp.float32)
    scale = 1.0 / math.sqrt(D)
    params = {
        'in_proj_w':  jax.random.normal(ks[1], (3 * D, D), jnp.float32) * scale,
        'in_proj_b':  jax.random.normal(ks[2], (3 * D,), jnp.float32) * 0.02,
        'out_proj_w': jax.random.normal(ks[3], (D, D), jnp.float32) * scale,
        'out_proj_b': jax.random.normal(ks[4], (D,), jnp.float32) * 0.02,
        'w1':         jax.random.normal(ks[5], (D, D), jnp.float32) * scale,
        'b1':         jax.random.normal(ks[6], (D,), jnp.float32) * 0.02,
        'w2':         jax.random.normal(ks[7], (D, D), jnp.float32) * scale,
        'b2':         jax.random.normal(ks[8], (D,), jnp.float32) * 0.02,
        'ln1_g': jnp.ones((D,), jnp.float32),
        'ln1_b': jnp.zeros((D,), jnp.float32),
        'ln2_g': jnp.ones((D,), jnp.float32),
        'ln2_b': jnp.zeros((D,), jnp.float32),
    }

    prep = prepare_params(params)                 # one-time prep, outside the jit
    fwd = jax.jit(transformer_layer)
    out = jax.block_until_ready(fwd(x, prep))
    ref = reference(x, params)

    assert out.shape == (S, B, D)
    err = float(jnp.max(jnp.abs(out - ref)))
    assert jnp.allclose(out, ref, atol=1e-3, rtol=1e-3), err
    print("KERNEL_OK")
</pallas_src>

<mosaic_0001>
module attributes {stable_mosaic.version = 11 : i64} {
  func.func @transformer_layer_kernel(%arg0: i32, %arg1: memref<1x8x32xf32, #tpu.memory_space<vmem>>, %arg2: memref<3x4x32x8xf32, #tpu.memory_space<vmem>>, %arg3: memref<3x4x1x8xf32, #tpu.memory_space<vmem>>, %arg4: memref<4x8x32xf32, #tpu.memory_space<vmem>>, %arg5: memref<2x32x32xf32, #tpu.memory_space<vmem>>, %arg6: memref<8x32xf32, #tpu.memory_space<vmem>>, %arg7: memref<1x8x32xf32, #tpu.memory_space<vmem>>) attributes {dimension_semantics = [#tpu.dimension_semantics<parallel>], iteration_bounds = array<i64: 2>, scalar_prefetch = 0 : i64, scratch_operands = 0 : i64, tpu.core_type = #tpu.core_type<tc>, window_params = [{transform_indices = @transform_0, window_bounds = array<i64: 1, 8, 32>}, {pipeline_mode = #tpu.pipeline_mode<synchronous>, transform_indices = @transform_1, window_bounds = array<i64: 3, 4, 32, 8>}, {pipeline_mode = #tpu.pipeline_mode<synchronous>, transform_indices = @transform_2, window_bounds = array<i64: 3, 4, 1, 8>}, {pipeline_mode = #tpu.pipeline_mode<synchronous>, transform_indices = @transform_3, window_bounds = array<i64: 4, 8, 32>}, {pipeline_mode = #tpu.pipeline_mode<synchronous>, transform_indices = @transform_4, window_bounds = array<i64: 2, 32, 32>}, {pipeline_mode = #tpu.pipeline_mode<synchronous>, transform_indices = @transform_5, window_bounds = array<i64: 8, 32>}, {transform_indices = @transform_6, window_bounds = array<i64: 1, 8, 32>}]} {
    %c0 = arith.constant 0 : index
    %c0_0 = arith.constant 0 : index
    %c0_1 = arith.constant 0 : index
    %0 = vector.load %arg1[%c0, %c0_0, %c0_1] : memref<1x8x32xf32, #tpu.memory_space<vmem>>, vector<1x8x32xf32>
    %1 = vector.shape_cast %0 : vector<1x8x32xf32> to vector<8x32xf32>
    %c0_2 = arith.constant 0 : index
    %c0_3 = arith.constant 0 : index
    %2 = vector.load %arg6[%c0_2, %c0_3] : memref<8x32xf32, #tpu.memory_space<vmem>>, vector<8x32xf32>
    %3 = vector.extract_strided_slice %2 {offsets = [0, 0], sizes = [1, 32], strides = [1, 1]} : vector<8x32xf32> to vector<1x32xf32>
    %4 = vector.extract_strided_slice %2 {offsets = [1, 0], sizes = [1, 32], strides = [1, 1]} : vector<8x32xf32> to vector<1x32xf32>
    %5 = vector.extract_strided_slice %2 {offsets = [2, 0], sizes = [1, 32], strides = [1, 1]} : vector<8x32xf32> to vector<1x32xf32>
    %6 = vector.extract_strided_slice %2 {offsets = [3, 0], sizes = [1, 32], strides = [1, 1]} : vector<8x32xf32> to vector<1x32xf32>
    %7 = vector.extract_strided_slice %2 {offsets = [4, 0], sizes = [1, 32], strides = [1, 1]} : vector<8x32xf32> to vector<1x32xf32>
    %8 = vector.extract_strided_slice %2 {offsets = [5, 0], sizes = [1, 32], strides = [1, 1]} : vector<8x32xf32> to vector<1x32xf32>
    %9 = vector.extract_strided_slice %2 {offsets = [6, 0], sizes = [1, 32], strides = [1, 1]} : vector<8x32xf32> to vector<1x32xf32>
    %10 = vector.shape_cast %0 : vector<1x8x32xf32> to vector<1x1x8x32xf32>
    %11 = vector.shape_cast %10 : vector<1x1x8x32xf32> to vector<1x1x8x32xf32>
    %12 = vector.broadcast %11 : vector<1x1x8x32xf32> to vector<1x4x8x32xf32>
    %13 = vector.shape_cast %12 : vector<1x4x8x32xf32> to vector<4x8x32xf32>
    %c0_4 = arith.constant 0 : index
    %c0_5 = arith.constant 0 : index
    %c0_6 = arith.constant 0 : index
    %c0_7 = arith.constant 0 : index
    %14 = vector.load %arg2[%c0_4, %c0_5, %c0_6, %c0_7] : memref<3x4x32x8xf32, #tpu.memory_space<vmem>>, vector<1x4x32x8xf32>
    %15 = vector.shape_cast %14 : vector<1x4x32x8xf32> to vector<4x32x8xf32>
    "tpu.trace_start"() <{level = 10 : i32, message = "nsd,nde->nse"}> : () -> ()
    %cst = arith.constant dense<0.000000e+00> : vector<4x8x8xf32>
    %16 = tpu.matmul %13, %15, %cst {dimension_numbers = #tpu.dot_dimension_numbers<[2], [1], [1], [2], [0, 0, 0, 1, 1, 2], [0], [0]>} : vector<4x8x32xf32>, vector<4x32x8xf32>, vector<4x8x8xf32> -> vector<4x8x8xf32>
    "tpu.trace_stop"() : () -> ()
    %c0_8 = arith.constant 0 : index
    %c0_9 = arith.constant 0 : index
    %c0_10 = arith.constant 0 : index
    %c0_11 = arith.constant 0 : index
    %17 = vector.load %arg3[%c0_8, %c0_9, %c0_10, %c0_11] : memref<3x4x1x8xf32, #tpu.memory_space<vmem>>, vector<1x4x1x8xf32>
    %18 = vector.shape_cast %17 : vector<1x4x1x8xf32> to vector<4x1x8xf32>
    %19 = vector.broadcast %18 : vector<4x1x8xf32> to vector<4x8x8xf32>
    %20 = arith.addf %16, %19 : vector<4x8x8xf32>
    %c1 = arith.constant 1 : index
    %c0_12 = arith.constant 0 : index
    %c0_13 = arith.constant 0 : index
    %c0_14 = arith.constant 0 : index
    %21 = vector.load %arg2[%c1, %c0_12, %c0_13, %c0_14] : memref<3x4x32x8xf32, #tpu.memory_space<vmem>>, vector<1x4x32x8xf32>
    %22 = vector.shape_cast %21 : vector<1x4x32x8xf32> to vector<4x32x8xf32>
    "tpu.trace_start"() <{level = 10 : i32, message = "nsd,nde->nse"}> : () -> ()
    %cst_15 = arith.constant dense<0.000000e+00> : vector<4x8x8xf32>
    %23 = tpu.matmul %13, %22, %cst_15 {dimension_numbers = #tpu.dot_dimension_numbers<[2], [1], [1], [2], [0, 0, 0, 1, 1, 2], [0], [0]>} : vector<4x8x32xf32>, vector<4x32x8xf32>, vector<4x8x8xf32> -> vector<4x8x8xf32>
    "tpu.trace_stop"() : () -> ()
    %c1_16 = arith.constant 1 : index
    %c0_17 = arith.constant 0 : index
    %c0_18 = arith.constant 0 : index
    %c0_19 = arith.constant 0 : index
    %24 = vector.load %arg3[%c1_16, %c0_17, %c0_18, %c0_19] : memref<3x4x1x8xf32, #tpu.memory_space<vmem>>, vector<1x4x1x8xf32>
    %25 = vector.shape_cast %24 : vector<1x4x1x8xf32> to vector<4x1x8xf32>
    %26 = vector.broadcast %25 : vector<4x1x8xf32> to vector<4x8x8xf32>
    %27 = arith.addf %23, %26 : vector<4x8x8xf32>
    %c2 = arith.constant 2 : index
    %c0_20 = arith.constant 0 : index
    %c0_21 = arith.constant 0 : index
    %c0_22 = arith.constant 0 : index
    %28 = vector.load %arg2[%c2, %c0_20, %c0_21, %c0_22] : memref<3x4x32x8xf32, #tpu.memory_space<vmem>>, vector<1x4x32x8xf32>
    %29 = vector.shape_cast %28 : vector<1x4x32x8xf32> to vector<4x32x8xf32>
    "tpu.trace_start"() <{level = 10 : i32, message = "nsd,nde->nse"}> : () -> ()
    %cst_23 = arith.constant dense<0.000000e+00> : vector<4x8x8xf32>
    %30 = tpu.matmul %13, %29, %cst_23 {dimension_numbers = #tpu.dot_dimension_numbers<[2], [1], [1], [2], [0, 0, 0, 1, 1, 2], [0], [0]>} : vector<4x8x32xf32>, vector<4x32x8xf32>, vector<4x8x8xf32> -> vector<4x8x8xf32>
    "tpu.trace_stop"() : () -> ()
    %c2_24 = arith.constant 2 : index
    %c0_25 = arith.constant 0 : index
    %c0_26 = arith.constant 0 : index
    %c0_27 = arith.constant 0 : index
    %31 = vector.load %arg3[%c2_24, %c0_25, %c0_26, %c0_27] : memref<3x4x1x8xf32, #tpu.memory_space<vmem>>, vector<1x4x1x8xf32>
    %32 = vector.shape_cast %31 : vector<1x4x1x8xf32> to vector<4x1x8xf32>
    %33 = vector.broadcast %32 : vector<4x1x8xf32> to vector<4x8x8xf32>
    %34 = arith.addf %30, %33 : vector<4x8x8xf32>
    "tpu.trace_start"() <{level = 10 : i32, message = "nqd,nkd->nqk"}> : () -> ()
    %cst_28 = arith.constant dense<0.000000e+00> : vector<4x8x8xf32>
    %35 = tpu.matmul %20, %27, %cst_28 {dimension_numbers = #tpu.dot_dimension_numbers<[2], [2], [1], [1], [0, 0, 0, 1, 1, 1], [0], [0]>} : vector<4x8x8xf32>, vector<4x8x8xf32>, vector<4x8x8xf32> -> vector<4x8x8xf32>
    "tpu.trace_stop"() : () -> ()
    %cst_29 = arith.constant dense<0xFF800000> : vector<4x8xf32>
    %36 = vector.multi_reduction <maximumf>, %35, %cst_29 [2] : vector<4x8x8xf32> to vector<4x8xf32>
    %37 = vector.shape_cast %36 : vector<4x8xf32> to vector<4x8x1xf32>
    %38 = vector.broadcast %37 : vector<4x8x1xf32> to vector<4x8x8xf32>
    %39 = arith.subf %35, %38 : vector<4x8x8xf32>
    %40 = math.exp %39 : vector<4x8x8xf32>
    %cst_30 = arith.constant dense<0.000000e+00> : vector<4x8xf32>
    %41 = vector.multi_reduction <add>, %40, %cst_30 [2] : vector<4x8x8xf32> to vector<4x8xf32>
    %42 = vector.shape_cast %41 : vector<4x8xf32> to vector<4x8x1xf32>
    %43 = vector.broadcast %42 : vector<4x8x1xf32> to vector<4x8x8xf32>
    %44 = arith.divf %40, %43 : vector<4x8x8xf32>
    "tpu.trace_start"() <{level = 10 : i32, message = "nqk,nkd->nqd"}> : () -> ()
    %cst_31 = arith.constant dense<0.000000e+00> : vector<4x8x8xf32>
    %45 = tpu.matmul %44, %34, %cst_31 {dimension_numbers = #tpu.dot_dimension_numbers<[2], [1], [1], [2], [0, 0, 0, 1, 1, 2], [0], [0]>} : vector<4x8x8xf32>, vector<4x8x8xf32>, vector<4x8x8xf32> -> vector<4x8x8xf32>
    "tpu.trace_stop"() : () -> ()
    %c0_32 = arith.constant 0 : index
    %c0_33 = arith.constant 0 : index
    %c0_34 = arith.constant 0 : index
    %46 = vector.load %arg4[%c0_32, %c0_33, %c0_34] : memref<4x8x32xf32, #tpu.memory_space<vmem>>, vector<4x8x32xf32>
    "tpu.trace_start"() <{level = 10 : i32, message = "nse,ned->nsd"}> : () -> ()
    %cst_35 = arith.constant dense<0.000000e+00> : vector<4x8x32xf32>
    %47 = tpu.matmul %45, %46, %cst_35 {dimension_numbers = #tpu.dot_dimension_numbers<[2], [1], [1], [2], [0, 0, 0, 1, 1, 2], [0], [0]>} : vector<4x8x8xf32>, vector<4x8x32xf32>, vector<4x8x32xf32> -> vector<4x8x32xf32>
    "tpu.trace_stop"() : () -> ()
    %48 = vector.shape_cast %47 : vector<4x8x32xf32> to vector<1x4x8x32xf32>
    %cst_36 = arith.constant dense<0.000000e+00> : vector<1x8x32xf32>
    %49 = vector.multi_reduction <add>, %48, %cst_36 [1] : vector<1x4x8x32xf32> to vector<1x8x32xf32>
    %50 = vector.shape_cast %49 : vector<1x8x32xf32> to vector<8x32xf32>
    %51 = vector.broadcast %3 : vector<1x32xf32> to vector<8x32xf32>
    %52 = arith.addf %50, %51 : vector<8x32xf32>
    %53 = arith.addf %52, %1 : vector<8x32xf32>
    %cst_37 = arith.constant dense<0.000000e+00> : vector<8xf32>
    %54 = vector.multi_reduction <add>, %53, %cst_37 [1] : vector<8x32xf32> to vector<8xf32>
    %55 = vector.shape_cast %54 : vector<8xf32> to vector<8x1xf32>
    %cst_38 = arith.constant 3.200000e+01 : f32
    %56 = vector.broadcast %cst_38 : f32 to vector<8x1xf32>
    %57 = arith.divf %55, %56 : vector<8x1xf32>
    %58 = vector.broadcast %57 : vector<8x1xf32> to vector<8x32xf32>
    %59 = arith.subf %53, %58 : vector<8x32xf32>
    %60 = arith.mulf %59, %59 : vector<8x32xf32>
    %cst_39 = arith.constant dense<0.000000e+00> : vector<8xf32>
    %61 = vector.multi_reduction <add>, %60, %cst_39 [1] : vector<8x32xf32> to vector<8xf32>
    %62 = vector.shape_cast %61 : vector<8xf32> to vector<8x1xf32>
    %cst_40 = arith.constant 3.200000e+01 : f32
    %63 = vector.broadcast %cst_40 : f32 to vector<8x1xf32>
    %64 = arith.divf %62, %63 : vector<8x1xf32>
    %65 = vector.broadcast %57 : vector<8x1xf32> to vector<8x32xf32>
    %66 = arith.subf %53, %65 : vector<8x32xf32>
    %cst_41 = arith.constant 9.99999974E-6 : f32
    %67 = vector.broadcast %cst_41 : f32 to vector<8x1xf32>
    %68 = arith.addf %64, %67 : vector<8x1xf32>
    %69 = math.rsqrt %68 : vector<8x1xf32>
    %70 = vector.broadcast %69 : vector<8x1xf32> to vector<8x32xf32>
    %71 = arith.mulf %66, %70 : vector<8x32xf32>
    %72 = vector.broadcast %4 : vector<1x32xf32> to vector<8x32xf32>
    %73 = arith.mulf %71, %72 : vector<8x32xf32>
    %74 = vector.broadcast %5 : vector<1x32xf32> to vector<8x32xf32>
    %75 = arith.addf %73, %74 : vector<8x32xf32>
    %c0_42 = arith.constant 0 : index
    %c0_43 = arith.constant 0 : index
    %c0_44 = arith.constant 0 : index
    %76 = vector.load %arg5[%c0_42, %c0_43, %c0_44] : memref<2x32x32xf32, #tpu.memory_space<vmem>>, vector<1x32x32xf32>
    %77 = vector.shape_cast %76 : vector<1x32x32xf32> to vector<32x32xf32>
    %cst_45 = arith.constant dense<0.000000e+00> : vector<8x32xf32>
    %78 = tpu.matmul %75, %77, %cst_45 {dimension_numbers = #tpu.dot_dimension_numbers<[1], [0], [0], [1], [0, 0, 1, 1], [], []>} : vector<8x32xf32>, vector<32x32xf32>, vector<8x32xf32> -> vector<8x32xf32>
    %79 = vector.broadcast %6 : vector<1x32xf32> to vector<8x32xf32>
    %80 = arith.addf %78, %79 : vector<8x32xf32>
    %cst_46 = arith.constant 0.000000e+00 : f32
    %81 = vector.broadcast %cst_46 : f32 to vector<8x32xf32>
    %82 = arith.maximumf %80, %81 : vector<8x32xf32>
    %c1_47 = arith.constant 1 : index
    %c0_48 = arith.constant 0 : index
    %c0_49 = arith.constant 0 : index
    %83 = vector.load %arg5[%c1_47, %c0_48, %c0_49] : memref<2x32x32xf32, #tpu.memory_space<vmem>>, vector<1x32x32xf32>
    %84 = vector.shape_cast %83 : vector<1x32x32xf32> to vector<32x32xf32>
    %cst_50 = arith.constant dense<0.000000e+00> : vector<8x32xf32>
    %85 = tpu.matmul %82, %84, %cst_50 {dimension_numbers = #tpu.dot_dimension_numbers<[1], [0], [0], [1], [0, 0, 1, 1], [], []>} : vector<8x32xf32>, vector<32x32xf32>, vector<8x32xf32> -> vector<8x32xf32>
    %86 = vector.broadcast %7 : vector<1x32xf32> to vector<8x32xf32>
    %87 = arith.addf %85, %86 : vector<8x32xf32>
    %88 = arith.addf %1, %87 : vector<8x32xf32>
    %cst_51 = arith.constant dense<0.000000e+00> : vector<8xf32>
    %89 = vector.multi_reduction <add>, %88, %cst_51 [1] : vector<8x32xf32> to vector<8xf32>
    %90 = vector.shape_cast %89 : vector<8xf32> to vector<8x1xf32>
    %cst_52 = arith.constant 3.200000e+01 : f32
    %91 = vector.broadcast %cst_52 : f32 to vector<8x1xf32>
    %92 = arith.divf %90, %91 : vector<8x1xf32>
    %93 = vector.broadcast %92 : vector<8x1xf32> to vector<8x32xf32>
    %94 = arith.subf %88, %93 : vector<8x32xf32>
    %95 = arith.mulf %94, %94 : vector<8x32xf32>
    %cst_53 = arith.constant dense<0.000000e+00> : vector<8xf32>
    %96 = vector.multi_reduction <add>, %95, %cst_53 [1] : vector<8x32xf32> to vector<8xf32>
    %97 = vector.shape_cast %96 : vector<8xf32> to vector<8x1xf32>
    %cst_54 = arith.constant 3.200000e+01 : f32
    %98 = vector.broadcast %cst_54 : f32 to vector<8x1xf32>
    %99 = arith.divf %97, %98 : vector<8x1xf32>
    %100 = vector.broadcast %92 : vector<8x1xf32> to vector<8x32xf32>
    %101 = arith.subf %88, %100 : vector<8x32xf32>
    %cst_55 = arith.constant 9.99999974E-6 : f32
    %102 = vector.broadcast %cst_55 : f32 to vector<8x1xf32>
    %103 = arith.addf %99, %102 : vector<8x1xf32>
    %104 = math.rsqrt %103 : vector<8x1xf32>
    %105 = vector.broadcast %104 : vector<8x1xf32> to vector<8x32xf32>
    %106 = arith.mulf %101, %105 : vector<8x32xf32>
    %107 = vector.broadcast %8 : vector<1x32xf32> to vector<8x32xf32>
    %108 = arith.mulf %106, %107 : vector<8x32xf32>
    %109 = vector.broadcast %9 : vector<1x32xf32> to vector<8x32xf32>
    %110 = arith.addf %108, %109 : vector<8x32xf32>
    %111 = vector.shape_cast %110 : vector<8x32xf32> to vector<1x8x32xf32>
    %c0_56 = arith.constant 0 : index
    %c0_57 = arith.constant 0 : index
    %c0_58 = arith.constant 0 : index
    %112 = vector.load %arg7[%c0_56, %c0_57, %c0_58] : memref<1x8x32xf32, #tpu.memory_space<vmem>>, vector<1x8x32xf32>
    tpu.vector_store %arg7[%c0_56, %c0_57, %c0_58], %111 {strides = array<i32>} : memref<1x8x32xf32, #tpu.memory_space<vmem>>, vector<1x8x32xf32>,
    return
  }
  func.func @transform_0(%arg0: i32) -> (i32, i32, i32) {
    %c0_i32 = arith.constant 0 : i32
    %c0_i32_0 = arith.constant 0 : i32
    %c0_i32_1 = arith.constant 0 : i32
    return %arg0, %c0_i32, %c0_i32_0 : i32, i32, i32
  }
  func.func @transform_1(%arg0: i32) -> (i32, i32, i32, i32) {
    %c0_i32 = arith.constant 0 : i32
    %c0_i32_0 = arith.constant 0 : i32
    %c0_i32_1 = arith.constant 0 : i32
    %c0_i32_2 = arith.constant 0 : i32
    %c0_i32_3 = arith.constant 0 : i32
    return %c0_i32, %c0_i32_0, %c0_i32_1, %c0_i32_2 : i32, i32, i32, i32
  }
  func.func @transform_2(%arg0: i32) -> (i32, i32, i32, i32) {
    %c0_i32 = arith.constant 0 : i32
    %c0_i32_0 = arith.constant 0 : i32
    %c0_i32_1 = arith.constant 0 : i32
    %c0_i32_2 = arith.constant 0 : i32
    %c0_i32_3 = arith.constant 0 : i32
    return %c0_i32, %c0_i32_0, %c0_i32_1, %c0_i32_2 : i32, i32, i32, i32
  }
  func.func @transform_3(%arg0: i32) -> (i32, i32, i32) {
    %c0_i32 = arith.constant 0 : i32
    %c0_i32_0 = arith.constant 0 : i32
    %c0_i32_1 = arith.constant 0 : i32
    %c0_i32_2 = arith.constant 0 : i32
    return %c0_i32, %c0_i32_0, %c0_i32_1 : i32, i32, i32
  }
  func.func @transform_4(%arg0: i32) -> (i32, i32, i32) {
    %c0_i32 = arith.constant 0 : i32
    %c0_i32_0 = arith.constant 0 : i32
    %c0_i32_1 = arith.constant 0 : i32
    %c0_i32_2 = arith.constant 0 : i32
    return %c0_i32, %c0_i32_0, %c0_i32_1 : i32, i32, i32
  }
  func.func @transform_5(%arg0: i32) -> (i32, i32) {
    %c0_i32 = arith.constant 0 : i32
    %c0_i32_0 = arith.constant 0 : i32
    %c0_i32_1 = arith.constant 0 : i32
    return %c0_i32, %c0_i32_0 : i32, i32
  }
  func.func @transform_6(%arg0: i32) -> (i32, i32, i32) {
    %c0_i32 = arith.constant 0 : i32
    %c0_i32_0 = arith.constant 0 : i32
    %c0_i32_1 = arith.constant 0 : i32
    return %arg0, %c0_i32, %c0_i32_0 : i32, i32, i32
  }
}

</mosaic_0001>

<llo_original>
// kernel: transformer_layer.1
$region0: #{transformer_layer.1}
  #allocation0 [shape = 'u32[]', space=smem, size = 0x4, offset = 0x4, fixed_abs, tag = 'smem constant byte address 0x4 - core index']
  #allocation1 [shape = 'u32[144,128]{1,0:T(1,128)}', space=vmem, size = 0x12000, scoped, tag = 'internal scratch']
  %s0 = inlined_call_operand.vmem [shape: f32[2,8,32], index: 0, kind: input, shape index: {}]
  %s1 = inlined_call_operand.vmem [shape: f32[3,4,32,8], index: 1, kind: input, shape index: {}]
  %s2 = inlined_call_operand.vmem [shape: f32[3,4,1,8], index: 2, kind: input, shape index: {}]
  %s3 = inlined_call_operand.vmem [shape: f32[4,8,32], index: 3, kind: input, shape index: {}]
  %s4 = inlined_call_operand.vmem [shape: f32[2,32,32], index: 4, kind: input, shape index: {}]
  %s5 = inlined_call_operand.vmem [shape: f32[8,32], index: 5, kind: input, shape index: {}]
  %s6 = inlined_call_operand.vmem [shape: f32[2,8,32], index: 6, kind: output, shape index: {}]
  %s7 = sld [smem:[#allocation0]]
  $region57: #{transformer_layer.1} parent=0
    _
  %s9 = ssub.s32 1, %s7
  %s10 = scalar_select 0, %s9, %s7
  loop: start=0, step=1, limit=4
  $region2: #{transformer_layer.1} parent=0 // loop_pre_header
    _
  $region3: #{transformer_layer.1} parent=0 // loop_header
    %s12 = sphi 0, %s16
    %p13 = scmp.ge.s32.totalorder %s12, 4
    %s22 = sphi 0, %s24
    %s25 = sphi 0, %s22
    %s26 = sphi 0, %s25
    %s42 = sphi 0, %s26
    %s46 = sphi 0, %s46
    %s48 = sphi 0, %s46
    %s49 = sphi 0, %s48
    %s63 = sphi 0, %s49
    %s67 = sphi 0, %s67
    %s69 = sphi 0, %s67
    %s70 = sphi 0, %s69
    %s84 = sphi 0, %s70
    %s88 = sphi 0, %s88
    %s90 = sphi 0, %s88
    %s91 = sphi 0, %s90
    %s105 = sphi 0, %s91
    %s109 = sphi 0, %s109
    %s111 = sphi 0, %s109
    %s112 = sphi 0, %s111
    %s126 = sphi 0, %s112
    %s130 = sphi 0, %s130
    %s132 = sphi 0, %s130
    %s133 = sphi 0, %s132
    %s147 = sphi 0, %s133
    %s153 = sphi 0, %s155
    %s156 = sphi 0, %s153
    %s157 = sphi 0, %s156
    %s173 = sphi 0, %s157
  $region4: #{transformer_layer.1} parent=0 // loop_header_branch
    %15 = sbr.rel (%p13) target = $region8
  $region5: #{transformer_layer.1} parent=0 // loop_body
    %s17 = ssub.s32 %s12, 1
    %s18 = ssub.s32 %s12, 2
    %s19 = sadd.s32 %s12, 1
    %s20 = ssub.s32 %s12, %s19
    %p21 = scmp.eq.s32.totalorder %s20, 0
    %s23 = sadd.s32 %s22, 1
    %s24 = scalar_select %p21, %s22, %s23
    %p27 = pneg %p21
    %p28 = scmp.eq.s32.totalorder %s12, 1
    %p29 = por %p27, %p28
    %p30 = scmp.ne.s32.totalorder %s22, %s25
    %p31 = scmp.eq.s32.totalorder %s12, 0
    %p32 = por %p30, %p31
    %p33 = scmp.ne.s32.totalorder %s22, %s25
    %p34 = scmp.eq.s32.totalorder %s17, 1
    %p35 = por %p33, %p34
    %p36 = scmp.ne.s32.totalorder %s25, %s26
    %p37 = scmp.eq.s32.totalorder %s17, 0
    %p38 = por %p36, %p37
    %p39 = scmp.ne.s32.totalorder %s25, %s26
    %p40 = scmp.eq.s32.totalorder %s18, 1
    %p41 = por %p39, %p40
    %p43 = scmp.ne.s32.totalorder %s26, %s42
    %p44 = scmp.eq.s32.totalorder %s18, 0
    %p45 = por %p43, %p44
    %s47 = sadd.s32 %s46, 1
    %p50 = scmp.eq.s32.totalorder %s12, 1
    %p51 = scmp.ne.s32.totalorder %s46, %s48
    %p52 = scmp.eq.s32.totalorder %s12, 0
    %p53 = por %p51, %p52
    %p54 = scmp.ne.s32.totalorder %s46, %s48
    %p55 = scmp.eq.s32.totalorder %s17, 1
    %p56 = por %p54, %p55
    %p57 = scmp.ne.s32.totalorder %s48, %s49
    %p58 = scmp.eq.s32.totalorder %s17, 0
    %p59 = por %p57, %p58
    %p60 = scmp.ne.s32.totalorder %s48, %s49
    %p61 = scmp.eq.s32.totalorder %s18, 1
    %p62 = por %p60, %p61
    %p64 = scmp.ne.s32.totalorder %s49, %s63
    %p65 = scmp.eq.s32.totalorder %s18, 0
    %p66 = por %p64, %p65
    %s68 = sadd.s32 %s67, 1
    %p71 = scmp.eq.s32.totalorder %s12, 1
    %p72 = scmp.ne.s32.totalorder %s67, %s69
    %p73 = scmp.eq.s32.totalorder %s12, 0
    %p74 = por %p72, %p73
    %p75 = scmp.ne.s32.totalorder %s67, %s69
    %p76 = scmp.eq.s32.totalorder %s17, 1
    %p77 = por %p75, %p76
    %p78 = scmp.ne.s32.totalorder %s69, %s70
    %p79 = scmp.eq.s32.totalorder %s17, 0
    %p80 = por %p78, %p79
    %p81 = scmp.ne.s32.totalorder %s69, %s70
    %p82 = scmp.eq.s32.totalorder %s18, 1
    %p83 = por %p81, %p82
    %p85 = scmp.ne.s32.totalorder %s70, %s84
    %p86 = scmp.eq.s32.totalorder %s18, 0
    %p87 = por %p85, %p86
    %s89 = sadd.s32 %s88, 1
    %p92 = scmp.eq.s32.totalorder %s12, 1
    %p93 = scmp.ne.s32.totalorder %s88, %s90
    %p94 = scmp.eq.s32.totalorder %s12, 0
    %p95 = por %p93, %p94
    %p96 = scmp.ne.s32.totalorder %s88, %s90
    %p97 = scmp.eq.s32.totalorder %s17, 1
    %p98 = por %p96, %p97
    %p99 = scmp.ne.s32.totalorder %s90, %s91
    %p100 = scmp.eq.s32.totalorder %s17, 0
    %p101 = por %p99, %p100
    %p102 = scmp.ne.s32.totalorder %s90, %s91
    %p103 = scmp.eq.s32.totalorder %s18, 1
    %p104 = por %p102, %p103
    %p106 = scmp.ne.s32.totalorder %s91, %s105
    %p107 = scmp.eq.s32.totalorder %s18, 0
    %p108 = por %p106, %p107
    %s110 = sadd.s32 %s109, 1
    %p113 = scmp.eq.s32.totalorder %s12, 1
    %p114 = scmp.ne.s32.totalorder %s109, %s111
    %p115 = scmp.eq.s32.totalorder %s12, 0
    %p116 = por %p114, %p115
    %p117 = scmp.ne.s32.totalorder %s109, %s111
    %p118 = scmp.eq.s32.totalorder %s17, 1
    %p119 = por %p117, %p118
    %p120 = scmp.ne.s32.totalorder %s111, %s112
    %p121 = scmp.eq.s32.totalorder %s17, 0
    %p122 = por %p120, %p121
    %p123 = scmp.ne.s32.totalorder %s111, %s112
    %p124 = scmp.eq.s32.totalorder %s18, 1
    %p125 = por %p123, %p124
    %p127 = scmp.ne.s32.totalorder %s112, %s126
    %p128 = scmp.eq.s32.totalorder %s18, 0
    %p129 = por %p127, %p128
    %s131 = sadd.s32 %s130, 1
    %p134 = scmp.eq.s32.totalorder %s12, 1
    %p135 = scmp.ne.s32.totalorder %s130, %s132
    %p136 = scmp.eq.s32.totalorder %s12, 0
    %p137 = por %p135, %p136
    %p138 = scmp.ne.s32.totalorder %s130, %s132
    %p139 = scmp.eq.s32.totalorder %s17, 1
    %p140 = por %p138, %p139
    %p141 = scmp.ne.s32.totalorder %s132, %s133
    %p142 = scmp.eq.s32.totalorder %s17, 0
    %p143 = por %p141, %p142
    %p144 = scmp.ne.s32.totalorder %s132, %s133
    %p145 = scmp.eq.s32.totalorder %s18, 1
    %p146 = por %p144, %p145
    %p148 = scmp.ne.s32.totalorder %s133, %s147
    %p149 = scmp.eq.s32.totalorder %s18, 0
    %p150 = por %p148, %p149
    %s151 = ssub.s32 %s12, %s19
    %p152 = scmp.eq.s32.totalorder %s151, 0
    %s154 = sadd.s32 %s153, 1
    %s155 = scalar_select %p152, %s153, %s154
    %p158 = pneg %p152
    %p159 = scmp.eq.s32.totalorder %s12, 1
    %p160 = por %p158, %p159
    %p161 = scmp.ne.s32.totalorder %s153, %s156
    %p162 = scmp.eq.s32.totalorder %s12, 0
    %p163 = por %p161, %p162
    %p164 = scmp.ne.s32.totalorder %s153, %s156
    %p165 = scmp.eq.s32.totalorder %s17, 1
    %p166 = por %p164, %p165
    %p167 = scmp.ne.s32.totalorder %s156, %s157
    %p168 = scmp.eq.s32.totalorder %s17, 0
    %p169 = por %p167, %p168
    %p170 = scmp.ne.s32.totalorder %s156, %s157
    %p171 = scmp.eq.s32.totalorder %s18, 1
    %p172 = por %p170, %p171
    %p174 = scmp.ne.s32.totalorder %s157, %s173
    %p175 = scmp.eq.s32.totalorder %s18, 0
    %p176 = por %p174, %p175
    %p177 = scmp.le.s32.totalorder 1, %s12
    %p178 = scmp.lt.s32.totalorder %s12, 3
    %p179 = pnand %p177, %p178
    %p180 = pneg %p179
    // Predicated region
    $region9: #{transformer_layer.1} parent=5 // pred_check
      _
    $region10: #{transformer_layer.1} parent=5 // pred_check_branch
      %182 = sbr.rel (%p179) target = $region12
    $region11: #{transformer_layer.1} parent=5 // pred_region
      %s183 = ssub.s32 %s12, 1
      // Predicated region
      $region13: #{transformer_layer.1} parent=11 // pred_check
        %p184 = pneg %p59
      $region14: #{transformer_layer.1} parent=11 // pred_check_branch
        %186 = sbr.rel (%p184) target = $region16
      $region15: #{transformer_layer.1} parent=11 // pred_region
        _
      $region16: #{transformer_layer.1} parent=11 // pred_fallthru
        _
      // Predicated region
      $region17: #{transformer_layer.1} parent=11 // pred_check
        %p187 = pneg %p80
      $region18: #{transformer_layer.1} parent=11 // pred_check_branch
        %189 = sbr.rel (%p187) target = $region20
      $region19: #{transformer_layer.1} parent=11 // pred_region
        _
      $region20: #{transformer_layer.1} parent=11 // pred_fallthru
        _
      // Predicated region
      $region21: #{transformer_layer.1} parent=11 // pred_check
        %p190 = pneg %p101
      $region22: #{transformer_layer.1} parent=11 // pred_check_branch
        %192 = sbr.rel (%p190) target = $region24
      $region23: #{transformer_layer.1} parent=11 // pred_region
        _
      $region24: #{transformer_layer.1} parent=11 // pred_fallthru
        _
      // Predicated region
      $region25: #{transformer_layer.1} parent=11 // pred_check
        %p193 = pneg %p122
      $region26: #{transformer_layer.1} parent=11 // pred_check_branch
        %195 = sbr.rel (%p193) target = $region28
      $region27: #{transformer_layer.1} parent=11 // pred_region
        _
      $region28: #{transformer_layer.1} parent=11 // pred_fallthru
        _
      // Predicated region
      $region29: #{transformer_layer.1} parent=11 // pred_check
        %p196 = pneg %p143
      $region30: #{transformer_layer.1} parent=11 // pred_check_branch
        %198 = sbr.rel (%p196) target = $region32
      $region31: #{transformer_layer.1} parent=11 // pred_region
        _
      $region32: #{transformer_layer.1} parent=11 // pred_fallthru
        _
    $region12: #{transformer_layer.1} parent=5 // pred_fallthru
      _
    %p199 = scmp.lt.s32.totalorder %s12, 2
    // Predicated region
    $region33: #{transformer_layer.1} parent=5 // pred_check
      %p200 = pneg %p199
    $region34: #{transformer_layer.1} parent=5 // pred_check_branch
      %202 = sbr.rel (%p200) target = $region36
    $region35: #{transformer_layer.1} parent=5 // pred_region
      // Predicated region
      $region37: #{transformer_layer.1} parent=35 // pred_check
        %p203 = pneg %p32
      $region38: #{transformer_layer.1} parent=35 // pred_check_branch
        %205 = sbr.rel (%p203) target = $region40
      $region39: #{transformer_layer.1} parent=35 // pred_region
        %p206 = scmp.lt.s32.totalorder %s12, 1
        %s207 = scalar_select %p206, %s12, 1
        %s208 = smul.addr %s207, 8
        %s209 = scalar_lea.vmem %s0, %s208
      $region40: #{transformer_layer.1} parent=35 // pred_fallthru
        _
    $region36: #{transformer_layer.1} parent=5 // pred_fallthru
      _
    %p210 = scmp.le.s32.totalorder 1, %s12
    %p211 = scmp.lt.s32.totalorder %s12, 3
    %p212 = pnand %p210, %p211
    %p213 = pneg %p212
    // Predicated region
    $region41: #{transformer_layer.1} parent=5 // pred_check
      _
    $region42: #{transformer_layer.1} parent=5 // pred_check_branch
      %215 = sbr.rel (%p212) target = $region44
    $region43: #{transformer_layer.1} parent=5 // pred_region
      %s216 = ssub.s32 %s12, 1
      %p217 = scmp.lt.s32.totalorder %s17, 1
      %s218 = scalar_select %p217, %s17, 1
      %s219 = smul.addr %s218, 8
      %s220 = scalar_lea.vmem %s0, %s219
      %p221 = pneg %p38
      %p222 = pneg %p35
      %p223 = pneg %p59
      %p224 = pneg %p56
      %p225 = pneg %p80
      %p226 = pneg %p77
      %p227 = pneg %p101
      %p228 = pneg %p98
      %p229 = pneg %p122
      %p230 = pneg %p119
      %p231 = pneg %p143
      %p232 = pneg %p140
      %p233 = pneg %p169
      %p234 = pneg %p166
      %p235 = scmp.lt.s32.totalorder %s17, 1
      %s236 = scalar_select %p235, %s17, 1
      %s237 = smul.addr %s236, 8
      %s238 = scalar_lea.vmem %s6, %s237
      %p239 = scmp.lt.s32.totalorder %s17, 1
      %s240 = scalar_select %p239, %s17, 1
      %s241 = smul.addr %s240, 8
      %s242 = scalar_lea.vmem %s0, %s241
      %p243 = scmp.lt.s32.totalorder %s17, 1
      %s244 = scalar_select %p243, %s17, 1
      %s245 = smul.addr %s244, 8
      %s246 = scalar_lea.vmem %s6, %s245
      %v247 = vld [vmem:[%s242] sm:$0xff]
      %v248 = vld [vmem:[%s5] sm:$0xff]
      %v249 = vld [vmem:[%s1] sm:$0xff]
      %v250 = vld [vmem:[%s1 + $0x8] sm:$0xff]
      %v251 = vld [vmem:[%s1 + $0x10] sm:$0xff]
      %v252 = vld [vmem:[%s1 + $0x18] sm:$0xff]
      %v253 = vld [vmem:[%s1 + $0x20] sm:$0xff]
      %v254 = vld [vmem:[%s1 + $0x28] sm:$0xff]
      %v255 = vld [vmem:[%s1 + $0x30] sm:$0xff]
      %v256 = vld [vmem:[%s1 + $0x38] sm:$0xff]
      %v257 = vld [vmem:[%s1 + $0x40] sm:$0xff]
      %v258 = vld [vmem:[%s1 + $0x48] sm:$0xff]
      %v259 = vld [vmem:[%s1 + $0x50] sm:$0xff]
      %v260 = vld [vmem:[%s1 + $0x58] sm:$0xff]
      %v261 = vld [vmem:[%s1 + $0x60] sm:$0xff]
      %v262 = vld [vmem:[%s1 + $0x68] sm:$0xff]
      %v263 = vld [vmem:[%s1 + $0x70] sm:$0xff]
      %v264 = vld [vmem:[%s1 + $0x78] sm:$0xff]
      %v265 = vld [vmem:[%s2] sm:$0x1]
      %v266 = vld [vmem:[%s2 + $0x1] sm:$0x1]
      %v267 = vld [vmem:[%s2 + $0x2] sm:$0x1]
      %v268 = vld [vmem:[%s2 + $0x3] sm:$0x1]
      %v273 = vlaneseq
      %v274 = vshrl.u32 %v273, 7
      %v275 = vsub.s32 0, %v274
      %v276 = vrot.slane %v265, %v275
      %v277 = vlaneseq
      %v278 = vshrl.u32 %v277, 7
      %v279 = vsub.s32 0, %v278
      %v280 = vrot.slane %v266, %v279
      %v281 = vlaneseq
      %v282 = vshrl.u32 %v281, 7
      %v283 = vsub.s32 0, %v282
      %v284 = vrot.slane %v267, %v283
      %v285 = vlaneseq
      %v286 = vshrl.u32 %v285, 7
      %v287 = vsub.s32 0, %v286
      %v288 = vrot.slane %v268, %v287
      %vm293 = vcmask 261120
      %v295 = vsel %vm293, %v247, 0
      %297 = vmatprep.subr.mxu0 0.0
      %298 = vmatpush1.msra.mxu0 0.0
      %299 = vmatprep.subr.mxu0 0.0
      %300 = vmatpush1.msra.mxu0 0.0
      %301 = vmatprep.subr.mxu0 0.0
      %302 = vmatpush1.msra.mxu0 0.0
      %303 = vmatprep.subr.mxu0 0.0
      %304 = vmatpush1.msra.mxu0 0.0
      %305 = vmatprep.subr.mxu0 0.0
      %306 = vmatpush1.msra.mxu0 0.0
      %307 = vmatprep.subr.mxu0 0.0
      %308 = vmatpush1.msra.mxu0 0.0
      %309 = vmatprep.subr.mxu0 0.0
      %310 = vmatpush1.msra.mxu0 0.0
      %311 = vmatprep.subr.mxu0 0.0
      %312 = vmatpush1.msra.mxu0 0.0
      %313 = vmatprep.subr.mxu0 0.0
      %314 = vmatpush1.msra.mxu0 0.0
      %315 = vmatprep.subr.mxu0 0.0
      %316 = vmatpush1.msra.mxu0 0.0
      %317 = vmatprep.subr.mxu0 0.0
      %318 = vmatpush1.msra.mxu0 0.0
      %319 = vmatprep.subr.mxu0 0.0
      %320 = vmatpush1.msra.mxu0 0.0
      %321 = vmatprep.subr.mxu0 0.0
      %322 = vmatpush1.msra.mxu0 %v252
      %323 = vmatprep.subr.mxu0 0.0
      %324 = vmatpush1.msra.mxu0 %v251
      %325 = vmatprep.subr.mxu0 0.0
      %326 = vmatpush1.msra.mxu0 %v250
      %327 = vmatprep.subr.mxu0 0.0
      %328 = vmatpush1.msra.mxu0 %v249
      %329 = vmatprep.subr.mxu0 0.0
      %330 = vmatpush2.msra.mxu0 0.0
      %331 = vmatprep.subr.mxu0 0.0
      %332 = vmatpush2.msra.mxu0 0.0
      %333 = vmatprep.subr.mxu0 0.0
      %334 = vmatpush2.msra.mxu0 0.0
      %335 = vmatprep.subr.mxu0 0.0
      %336 = vmatpush2.msra.mxu0 0.0
      %337 = vmatprep.subr.mxu0 0.0
      %338 = vmatpush2.msra.mxu0 0.0
      %339 = vmatprep.subr.mxu0 0.0
      %340 = vmatpush2.msra.mxu0 0.0
      %341 = vmatprep.subr.mxu0 0.0
      %342 = vmatpush2.msra.mxu0 0.0
      %343 = vmatprep.subr.mxu0 0.0
      %344 = vmatpush2.msra.mxu0 0.0
      %345 = vmatprep.subr.mxu0 0.0
      %346 = vmatpush2.msra.mxu0 0.0
      %347 = vmatprep.subr.mxu0 0.0
      %348 = vmatpush2.msra.mxu0 0.0
      %349 = vmatprep.subr.mxu0 0.0
      %350 = vmatpush2.msra.mxu0 0.0
      %351 = vmatprep.subr.mxu0 0.0
      %352 = vmatpush2.msra.mxu0 0.0
      %353 = vmatprep.subr.mxu0 0.0
      %354 = vmatpush2.msra.mxu0 0.0
      %355 = vmatprep.subr.mxu0 0.0
      %356 = vmatpush2.msra.mxu0 0.0
      %357 = vmatprep.subr.mxu0 0.0
      %358 = vmatpush2.msra.mxu0 0.0
      %359 = vmatprep.subr.mxu0 0.0
      %360 = vmatpush2.msra.mxu0 0.0
      %361 = vmatprep.mubr.f32.mxu0 0.0
      %362 = vmatmul.mubr.f32.gmra.mxu0 %v295
      %v363 = vpop.f32.mrf.mxu0
      %v364 = vadd.f32 %v276, %v363
      %v365 = vpop.f32.mrf.mxu0
      %366 = vdwg.mxu0
      %367 = vmatprep.subr.mxu0 0.0
      %368 = vmatpush1.msra.mxu0 0.0
      %369 = vmatprep.subr.mxu0 0.0
      %370 = vmatpush1.msra.mxu0 0.0
      %371 = vmatprep.subr.mxu0 0.0
      %372 = vmatpush1.msra.mxu0 0.0
      %373 = vmatprep.subr.mxu0 0.0
      %374 = vmatpush1.msra.mxu0 0.0
      %375 = vmatprep.subr.mxu0 0.0
      %376 = vmatpush1.msra.mxu0 0.0
      %377 = vmatprep.subr.mxu0 0.0
      %378 = vmatpush1.msra.mxu0 0.0
      %379 = vmatprep.subr.mxu0 0.0
      %380 = vmatpush1.msra.mxu0 0.0
      %381 = vmatprep.subr.mxu0 0.0
      %382 = vmatpush1.msra.mxu0 0.0
      %383 = vmatprep.subr.mxu0 0.0
      %384 = vmatpush1.msra.mxu0 0.0
      %385 = vmatprep.subr.mxu0 0.0
      %386 = vmatpush1.msra.mxu0 0.0
      %387 = vmatprep.subr.mxu0 0.0
      %388 = vmatpush1.msra.mxu0 0.0
      %389 = vmatprep.subr.mxu0 0.0
      %390 = vmatpush1.msra.mxu0 0.0
      %391 = vmatprep.subr.mxu0 0.0
      %392 = vmatpush1.msra.mxu0 %v256
      %393 = vmatprep.subr.mxu0 0.0
      %394 = vmatpush1.msra.mxu0 %v255
      %395 = vmatprep.subr.mxu0 0.0
      %396 = vmatpush1.msra.mxu0 %v254
      %397 = vmatprep.subr.mxu0 0.0
      %398 = vmatpush1.msra.mxu0 %v253
      %399 = vmatprep.subr.mxu0 0.0
      %400 = vmatpush2.msra.mxu0 0.0
      %401 = vmatprep.subr.mxu0 0.0
      %402 = vmatpush2.msra.mxu0 0.0
      %403 = vmatprep.subr.mxu0 0.0
      %404 = vmatpush2.msra.mxu0 0.0
      %405 = vmatprep.subr.mxu0 0.0
      %406 = vmatpush2.msra.mxu0 0.0
      %407 = vmatprep.subr.mxu0 0.0
      %408 = vmatpush2.msra.mxu0 0.0
      %409 = vmatprep.subr.mxu0 0.0
      %410 = vmatpush2.msra.mxu0 0.0
      %411 = vmatprep.subr.mxu0 0.0
      %412 = vmatpush2.msra.mxu0 0.0
      %413 = vmatprep.subr.mxu0 0.0
      %414 = vmatpush2.msra.mxu0 0.0
      %415 = vmatprep.subr.mxu0 0.0
      %416 = vmatpush2.msra.mxu0 0.0
      %417 = vmatprep.subr.mxu0 0.0
      %418 = vmatpush2.msra.mxu0 0.0
      %419 = vmatprep.subr.mxu0 0.0
      %420 = vmatpush2.msra.mxu0 0.0
      %421 = vmatprep.subr.mxu0 0.0
      %422 = vmatpush2.msra.mxu0 0.0
      %423 = vmatprep.subr.mxu0 0.0
      %424 = vmatpush2.msra.mxu0 0.0
      %425 = vmatprep.subr.mxu0 0.0
      %426 = vmatpush2.msra.mxu0 0.0
      %427 = vmatprep.subr.mxu0 0.0
      %428 = vmatpush2.msra.mxu0 0.0
      %429 = vmatprep.subr.mxu0 0.0
      %430 = vmatpush2.msra.mxu0 0.0
      %431 = vmatprep.mubr.f32.mxu0 0.0
      %432 = vmatmul.mubr.f32.gmra.mxu0 %v295
      %v433 = vpop.f32.mrf.mxu0
      %v434 = vadd.f32 %v280, %v433
      %v435 = vpop.f32.mrf.mxu0
      %436 = vdwg.mxu0
      %437 = vmatprep.subr.mxu0 0.0
      %438 = vmatpush1.msra.mxu0 0.0
      %439 = vmatprep.subr.mxu0 0.0
      %440 = vmatpush1.msra.mxu0 0.0
      %441 = vmatprep.subr.mxu0 0.0
      %442 = vmatpush1.msra.mxu0 0.0
      %443 = vmatprep.subr.mxu0 0.0
      %444 = vmatpush1.msra.mxu0 0.0
      %445 = vmatprep.subr.mxu0 0.0
      %446 = vmatpush1.msra.mxu0 0.0
      %447 = vmatprep.subr.mxu0 0.0
      %448 = vmatpush1.msra.mxu0 0.0
      %449 = vmatprep.subr.mxu0 0.0
      %450 = vmatpush1.msra.mxu0 0.0
      %451 = vmatprep.subr.mxu0 0.0
      %452 = vmatpush1.msra.mxu0 0.0
      %453 = vmatprep.subr.mxu0 0.0
      %454 = vmatpush1.msra.mxu0 0.0
      %455 = vmatprep.subr.mxu0 0.0
      %456 = vmatpush1.msra.mxu0 0.0
      %457 = vmatprep.subr.mxu0 0.0
      %458 = vmatpush1.msra.mxu0 0.0
      %459 = vmatprep.subr.mxu0 0.0
      %460 = vmatpush1.msra.mxu0 0.0
      %461 = vmatprep.subr.mxu0 0.0
      %462 = vmatpush1.msra.mxu0 %v260
      %463 = vmatprep.subr.mxu0 0.0
      %464 = vmatpush1.msra.mxu0 %v259
      %465 = vmatprep.subr.mxu0 0.0
      %466 = vmatpush1.msra.mxu0 %v258
      %467 = vmatprep.subr.mxu0 0.0
      %468 = vmatpush1.msra.mxu0 %v257
      %469 = vmatprep.subr.mxu0 0.0
      %470 = vmatpush2.msra.mxu0 0.0
      %471 = vmatprep.subr.mxu0 0.0
      %472 = vmatpush2.msra.mxu0 0.0
      %473 = vmatprep.subr.mxu0 0.0
      %474 = vmatpush2.msra.mxu0 0.0
      %475 = vmatprep.subr.mxu0 0.0
      %476 = vmatpush2.msra.mxu0 0.0
      %477 = vmatprep.subr.mxu0 0.0
      %478 = vmatpush2.msra.mxu0 0.0
      %479 = vmatprep.subr.mxu0 0.0
      %480 = vmatpush2.msra.mxu0 0.0
      %481 = vmatprep.subr.mxu0 0.0
      %482 = vmatpush2.msra.mxu0 0.0
      %483 = vmatprep.subr.mxu0 0.0
      %484 = vmatpush2.msra.mxu0 0.0
      %485 = vmatprep.subr.mxu0 0.0
      %486 = vmatpush2.msra.mxu0 0.0
      %487 = vmatprep.subr.mxu0 0.0
      %488 = vmatpush2.msra.mxu0 0.0
      %489 = vmatprep.subr.mxu0 0.0
      %490 = vmatpush2.msra.mxu0 0.0
      %491 = vmatprep.subr.mxu0 0.0
      %492 = vmatpush2.msra.mxu0 0.0
      %493 = vmatprep.subr.mxu0 0.0
      %494 = vmatpush2.msra.mxu0 0.0
      %495 = vmatprep.subr.mxu0 0.0
      %496 = vmatpush2.msra.mxu0 0.0
      %497 = vmatprep.subr.mxu0 0.0
      %498 = vmatpush2.msra.mxu0 0.0
      %499 = vmatprep.subr.mxu0 0.0
      %500 = vmatpush2.msra.mxu0 0.0
      %501 = vmatprep.mubr.f32.mxu0 0.0
      %502 = vmatmul.mubr.f32.gmra.mxu0 %v295
      %v503 = vpop.f32.mrf.mxu0
      %v504 = vadd.f32 %v284, %v503
      %v505 = vpop.f32.mrf.mxu0
      %506 = vdwg.mxu0
      %507 = vmatprep.subr.mxu0 0.0
      %508 = vmatpush1.msra.mxu0 0.0
      %509 = vmatprep.subr.mxu0 0.0
      %510 = vmatpush1.msra.mxu0 0.0
      %511 = vmatprep.subr.mxu0 0.0
      %512 = vmatpush1.msra.mxu0 0.0
      %513 = vmatprep.subr.mxu0 0.0
      %514 = vmatpush1.msra.mxu0 0.0
      %515 = vmatprep.subr.mxu0 0.0
      %516 = vmatpush1.msra.mxu0 0.0
      %517 = vmatprep.subr.mxu0 0.0
      %518 = vmatpush1.msra.mxu0 0.0
      %519 = vmatprep.subr.mxu0 0.0
      %520 = vmatpush1.msra.mxu0 0.0
      %521 = vmatprep.subr.mxu0 0.0
      %522 = vmatpush1.msra.mxu0 0.0
      %523 = vmatprep.subr.mxu0 0.0
      %524 = vmatpush1.msra.mxu0 0.0
      %525 = vmatprep.subr.mxu0 0.0
      %526 = vmatpush1.msra.mxu0 0.0
      %527 = vmatprep.subr.mxu0 0.0
      %528 = vmatpush1.msra.mxu0 0.0
      %529 = vmatprep.subr.mxu0 0.0
      %530 = vmatpush1.msra.mxu0 0.0
      %531 = vmatprep.subr.mxu0 0.0
      %532 = vmatpush1.msra.mxu0 %v264
      %533 = vmatprep.subr.mxu0 0.0
      %534 = vmatpush1.msra.mxu0 %v263
      %535 = vmatprep.subr.mxu0 0.0
      %536 = vmatpush1.msra.mxu0 %v262
      %537 = vmatprep.subr.mxu0 0.0
      %538 = vmatpush1.msra.mxu0 %v261
      %539 = vmatprep.subr.mxu0 0.0
      %540 = vmatpush2.msra.mxu0 0.0
      %541 = vmatprep.subr.mxu0 0.0
      %542 = vmatpush2.msra.mxu0 0.0
      %543 = vmatprep.subr.mxu0 0.0
      %544 = vmatpush2.msra.mxu0 0.0
      %545 = vmatprep.subr.mxu0 0.0
      %546 = vmatpush2.msra.mxu0 0.0
      %547 = vmatprep.subr.mxu0 0.0
      %548 = vmatpush2.msra.mxu0 0.0
      %549 = vmatprep.subr.mxu0 0.0
      %550 = vmatpush2.msra.mxu0 0.0
      %551 = vmatprep.subr.mxu0 0.0
      %552 = vmatpush2.msra.mxu0 0.0
      %553 = vmatprep.subr.mxu0 0.0
      %554 = vmatpush2.msra.mxu0 0.0
      %555 = vmatprep.subr.mxu0 0.0
      %556 = vmatpush2.msra.mxu0 0.0
      %557 = vmatprep.subr.mxu0 0.0
      %558 = vmatpush2.msra.mxu0 0.0
      %559 = vmatprep.subr.mxu0 0.0
      %560 = vmatpush2.msra.mxu0 0.0
      %561 = vmatprep.subr.mxu0 0.0
      %562 = vmatpush2.msra.mxu0 0.0
      %563 = vmatprep.subr.mxu0 0.0
      %564 = vmatpush2.msra.mxu0 0.0
      %565 = vmatprep.subr.mxu0 0.0
      %566 = vmatpush2.msra.mxu0 0.0
      %567 = vmatprep.subr.mxu0 0.0
      %568 = vmatpush2.msra.mxu0 0.0
      %569 = vmatprep.subr.mxu0 0.0
      %570 = vmatpush2.msra.mxu0 0.0
      %571 = vmatprep.mubr.f32.mxu0 0.0
      %572 = vmatmul.mubr.f32.gmra.mxu0 %v295
      %v573 = vpop.f32.mrf.mxu0
      %v574 = vadd.f32 %v288, %v573
      %v575 = vpop.f32.mrf.mxu0
      %576 = vdwg.mxu0
      %s577 = scalar_lea.vmem %s1, 128
      %v578 = vld [vmem:[%s577] sm:$0xff]
      %v579 = vld [vmem:[%s577 + $0x8] sm:$0xff]
      %v580 = vld [vmem:[%s577 + $0x10] sm:$0xff]
      %v581 = vld [vmem:[%s577 + $0x18] sm:$0xff]
      %v582 = vld [vmem:[%s577 + $0x20] sm:$0xff]
      %v583 = vld [vmem:[%s577 + $0x28] sm:$0xff]
      %v584 = vld [vmem:[%s577 + $0x30] sm:$0xff]
      %v585 = vld [vmem:[%s577 + $0x38] sm:$0xff]
      %v586 = vld [vmem:[%s577 + $0x40] sm:$0xff]
      %v587 = vld [vmem:[%s577 + $0x48] sm:$0xff]
      %v588 = vld [vmem:[%s577 + $0x50] sm:$0xff]
      %v589 = vld [vmem:[%s577 + $0x58] sm:$0xff]
      %v590 = vld [vmem:[%s577 + $0x60] sm:$0xff]
      %v591 = vld [vmem:[%s577 + $0x68] sm:$0xff]
      %v592 = vld [vmem:[%s577 + $0x70] sm:$0xff]
      %v593 = vld [vmem:[%s577 + $0x78] sm:$0xff]
      %s594 = scalar_lea.vmem %s2, 4
      %v595 = vld [vmem:[%s594] sm:$0x1]
      %v596 = vld [vmem:[%s594 + $0x1] sm:$0x1]
      %v597 = vld [vmem:[%s594 + $0x2] sm:$0x1]
      %v598 = vld [vmem:[%s594 + $0x3] sm:$0x1]
      %v603 = vlaneseq
      %v604 = vshrl.u32 %v603, 7
      %v605 = vsub.s32 0, %v604
      %v606 = vrot.slane %v595, %v605
      %v607 = vlaneseq
      %v608 = vshrl.u32 %v607, 7
      %v609 = vsub.s32 0, %v608
      %v610 = vrot.slane %v596, %v609
      %v611 = vlaneseq
      %v612 = vshrl.u32 %v611, 7
      %v613 = vsub.s32 0, %v612
      %v614 = vrot.slane %v597, %v613
      %v615 = vlaneseq
      %v616 = vshrl.u32 %v615, 7
      %v617 = vsub.s32 0, %v616
      %v618 = vrot.slane %v598, %v617
      %623 = vmatprep.subr.mxu0 0.0
      %624 = vmatpush1.msra.mxu0 0.0
      %625 = vmatprep.subr.mxu0 0.0
      %626 = vmatpush1.msra.mxu0 0.0
      %627 = vmatprep.subr.mxu0 0.0
      %628 = vmatpush1.msra.mxu0 0.0
      %629 = vmatprep.subr.mxu0 0.0
      %630 = vmatpush1.msra.mxu0 0.0
      %631 = vmatprep.subr.mxu0 0.0
      %632 = vmatpush1.msra.mxu0 0.0
      %633 = vmatprep.subr.mxu0 0.0
      %634 = vmatpush1.msra.mxu0 0.0
      %635 = vmatprep.subr.mxu0 0.0
      %636 = vmatpush1.msra.mxu0 0.0
      %637 = vmatprep.subr.mxu0 0.0
      %638 = vmatpush1.msra.mxu0 0.0
      %639 = vmatprep.subr.mxu0 0.0
      %640 = vmatpush1.msra.mxu0 0.0
      %641 = vmatprep.subr.mxu0 0.0
      %642 = vmatpush1.msra.mxu0 0.0
      %643 = vmatprep.subr.mxu0 0.0
      %644 = vmatpush1.msra.mxu0 0.0
      %645 = vmatprep.subr.mxu0 0.0
      %646 = vmatpush1.msra.mxu0 0.0
      %647 = vmatprep.subr.mxu0 0.0
      %648 = vmatpush1.msra.mxu0 %v581
      %649 = vmatprep.subr.mxu0 0.0
      %650 = vmatpush1.msra.mxu0 %v580
      %651 = vmatprep.subr.mxu0 0.0
      %652 = vmatpush1.msra.mxu0 %v579
      %653 = vmatprep.subr.mxu0 0.0
      %654 = vmatpush1.msra.mxu0 %v578
      %655 = vmatprep.subr.mxu0 0.0
      %656 = vmatpush2.msra.mxu0 0.0
      %657 = vmatprep.subr.mxu0 0.0
      %658 = vmatpush2.msra.mxu0 0.0
      %659 = vmatprep.subr.mxu0 0.0
      %660 = vmatpush2.msra.mxu0 0.0
      %661 = vmatprep.subr.mxu0 0.0
      %662 = vmatpush2.msra.mxu0 0.0
      %663 = vmatprep.subr.mxu0 0.0
      %664 = vmatpush2.msra.mxu0 0.0
      %665 = vmatprep.subr.mxu0 0.0
      %666 = vmatpush2.msra.mxu0 0.0
      %667 = vmatprep.subr.mxu0 0.0
      %668 = vmatpush2.msra.mxu0 0.0
      %669 = vmatprep.subr.mxu0 0.0
      %670 = vmatpush2.msra.mxu0 0.0
      %671 = vmatprep.subr.mxu0 0.0
      %672 = vmatpush2.msra.mxu0 0.0
      %673 = vmatprep.subr.mxu0 0.0
      %674 = vmatpush2.msra.mxu0 0.0
      %675 = vmatprep.subr.mxu0 0.0
      %676 = vmatpush2.msra.mxu0 0.0
      %677 = vmatprep.subr.mxu0 0.0
      %678 = vmatpush2.msra.mxu0 0.0
      %679 = vmatprep.subr.mxu0 0.0
      %680 = vmatpush2.msra.mxu0 0.0
      %681 = vmatprep.subr.mxu0 0.0
      %682 = vmatpush2.msra.mxu0 0.0
      %683 = vmatprep.subr.mxu0 0.0
      %684 = vmatpush2.msra.mxu0 0.0
      %685 = vmatprep.subr.mxu0 0.0
      %686 = vmatpush2.msra.mxu0 0.0
      %687 = vmatprep.mubr.f32.mxu0 0.0
      %688 = vmatmul.mubr.f32.gmra.mxu0 %v295
      %v689 = vpop.f32.mrf.mxu0
      %v690 = vadd.f32 %v606, %v689
      %v691 = vpop.f32.mrf.mxu0
      %692 = vdwg.mxu0
      %693 = vmatprep.subr.mxu0 0.0
      %694 = vmatpush1.msra.mxu0 0.0
      %695 = vmatprep.subr.mxu0 0.0
      %696 = vmatpush1.msra.mxu0 0.0
      %697 = vmatprep.subr.mxu0 0.0
      %698 = vmatpush1.msra.mxu0 0.0
      %699 = vmatprep.subr.mxu0 0.0
      %700 = vmatpush1.msra.mxu0 0.0
      %701 = vmatprep.subr.mxu0 0.0
      %702 = vmatpush1.msra.mxu0 0.0
      %703 = vmatprep.subr.mxu0 0.0
      %704 = vmatpush1.msra.mxu0 0.0
      %705 = vmatprep.subr.mxu0 0.0
      %706 = vmatpush1.msra.mxu0 0.0
      %707 = vmatprep.subr.mxu0 0.0
      %708 = vmatpush1.msra.mxu0 0.0
      %709 = vmatprep.subr.mxu0 0.0
      %710 = vmatpush1.msra.mxu0 0.0
      %711 = vmatprep.subr.mxu0 0.0
      %712 = vmatpush1.msra.mxu0 0.0
      %713 = vmatprep.subr.mxu0 0.0
      %714 = vmatpush1.msra.mxu0 0.0
      %715 = vmatprep.subr.mxu0 0.0
      %716 = vmatpush1.msra.mxu0 0.0
      %717 = vmatprep.subr.mxu0 0.0
      %718 = vmatpush1.msra.mxu0 %v585
      %719 = vmatprep.subr.mxu0 0.0
      %720 = vmatpush1.msra.mxu0 %v584
      %721 = vmatprep.subr.mxu0 0.0
      %722 = vmatpush1.msra.mxu0 %v583
      %723 = vmatprep.subr.mxu0 0.0
      %724 = vmatpush1.msra.mxu0 %v582
      %725 = vmatprep.subr.mxu0 0.0
      %726 = vmatpush2.msra.mxu0 0.0
      %727 = vmatprep.subr.mxu0 0.0
      %728 = vmatpush2.msra.mxu0 0.0
      %729 = vmatprep.subr.mxu0 0.0
      %730 = vmatpush2.msra.mxu0 0.0
      %731 = vmatprep.subr.mxu0 0.0
      %732 = vmatpush2.msra.mxu0 0.0
      %733 = vmatprep.subr.mxu0 0.0
      %734 = vmatpush2.msra.mxu0 0.0
      %735 = vmatprep.subr.mxu0 0.0
      %736 = vmatpush2.msra.mxu0 0.0
      %737 = vmatprep.subr.mxu0 0.0
      %738 = vmatpush2.msra.mxu0 0.0
      %739 = vmatprep.subr.mxu0 0.0
      %740 = vmatpush2.msra.mxu0 0.0
      %741 = vmatprep.subr.mxu0 0.0
      %742 = vmatpush2.msra.mxu0 0.0
      %743 = vmatprep.subr.mxu0 0.0
      %744 = vmatpush2.msra.mxu0 0.0
      %745 = vmatprep.subr.mxu0 0.0
      %746 = vmatpush2.msra.mxu0 0.0
      %747 = vmatprep.subr.mxu0 0.0
      %748 = vmatpush2.msra.mxu0 0.0
      %749 = vmatprep.subr.mxu0 0.0
      %750 = vmatpush2.msra.mxu0 0.0
      %751 = vmatprep.subr.mxu0 0.0
      %752 = vmatpush2.msra.mxu0 0.0
      %753 = vmatprep.subr.mxu0 0.0
      %754 = vmatpush2.msra.mxu0 0.0
      %755 = vmatprep.subr.mxu0 0.0
      %756 = vmatpush2.msra.mxu0 0.0
      %757 = vmatprep.mubr.f32.mxu0 0.0
      %758 = vmatmul.mubr.f32.gmra.mxu0 %v295
      %v759 = vpop.f32.mrf.mxu0
      %v760 = vadd.f32 %v610, %v759
      %v761 = vpop.f32.mrf.mxu0
      %762 = vdwg.mxu0
      %763 = vmatprep.subr.mxu0 0.0
      %764 = vmatpush1.msra.mxu0 0.0
      %765 = vmatprep.subr.mxu0 0.0
      %766 = vmatpush1.msra.mxu0 0.0
      %767 = vmatprep.subr.mxu0 0.0
      %768 = vmatpush1.msra.mxu0 0.0
      %769 = vmatprep.subr.mxu0 0.0
      %770 = vmatpush1.msra.mxu0 0.0
      %771 = vmatprep.subr.mxu0 0.0
      %772 = vmatpush1.msra.mxu0 0.0
      %773 = vmatprep.subr.mxu0 0.0
      %774 = vmatpush1.msra.mxu0 0.0
      %775 = vmatprep.subr.mxu0 0.0
      %776 = vmatpush1.msra.mxu0 0.0
      %777 = vmatprep.subr.mxu0 0.0
      %778 = vmatpush1.msra.mxu0 0.0
      %779 = vmatprep.subr.mxu0 0.0
      %780 = vmatpush1.msra.mxu0 0.0
      %781 = vmatprep.subr.mxu0 0.0
      %782 = vmatpush1.msra.mxu0 0.0
      %783 = vmatprep.subr.mxu0 0.0
      %784 = vmatpush1.msra.mxu0 0.0
      %785 = vmatprep.subr.mxu0 0.0
      %786 = vmatpush1.msra.mxu0 0.0
      %787 = vmatprep.subr.mxu0 0.0
      %788 = vmatpush1.msra.mxu0 %v589
      %789 = vmatprep.subr.mxu0 0.0
      %790 = vmatpush1.msra.mxu0 %v588
      %791 = vmatprep.subr.mxu0 0.0
      %792 = vmatpush1.msra.mxu0 %v587
      %793 = vmatprep.subr.mxu0 0.0
      %794 = vmatpush1.msra.mxu0 %v586
      %795 = vmatprep.subr.mxu0 0.0
      %796 = vmatpush2.msra.mxu0 0.0
      %797 = vmatprep.subr.mxu0 0.0
      %798 = vmatpush2.msra.mxu0 0.0
      %799 = vmatprep.subr.mxu0 0.0
      %800 = vmatpush2.msra.mxu0 0.0
      %801 = vmatprep.subr.mxu0 0.0
      %802 = vmatpush2.msra.mxu0 0.0
      %803 = vmatprep.subr.mxu0 0.0
      %804 = vmatpush2.msra.mxu0 0.0
      %805 = vmatprep.subr.mxu0 0.0
      %806 = vmatpush2.msra.mxu0 0.0
      %807 = vmatprep.subr.mxu0 0.0
      %808 = vmatpush2.msra.mxu0 0.0
      %809 = vmatprep.subr.mxu0 0.0
      %810 = vmatpush2.msra.mxu0 0.0
      %811 = vmatprep.subr.mxu0 0.0
      %812 = vmatpush2.msra.mxu0 0.0
      %813 = vmatprep.subr.mxu0 0.0
      %814 = vmatpush2.msra.mxu0 0.0
      %815 = vmatprep.subr.mxu0 0.0
      %816 = vmatpush2.msra.mxu0 0.0
      %817 = vmatprep.subr.mxu0 0.0
      %818 = vmatpush2.msra.mxu0 0.0
      %819 = vmatprep.subr.mxu0 0.0
      %820 = vmatpush2.msra.mxu0 0.0
      %821 = vmatprep.subr.mxu0 0.0
      %822 = vmatpush2.msra.mxu0 0.0
      %823 = vmatprep.subr.mxu0 0.0
      %824 = vmatpush2.msra.mxu0 0.0
      %825 = vmatprep.subr.mxu0 0.0
      %826 = vmatpush2.msra.mxu0 0.0
      %827 = vmatprep.mubr.f32.mxu0 0.0
      %828 = vmatmul.mubr.f32.gmra.mxu0 %v295
      %v829 = vpop.f32.mrf.mxu0
      %v830 = vadd.f32 %v614, %v829
      %v831 = vpop.f32.mrf.mxu0
      %832 = vdwg.mxu0
      %833 = vmatprep.subr.mxu0 0.0
      %834 = vmatpush1.msra.mxu0 0.0
      %835 = vmatprep.subr.mxu0 0.0
      %836 = vmatpush1.msra.mxu0 0.0
      %837 = vmatprep.subr.mxu0 0.0
      %838 = vmatpush1.msra.mxu0 0.0
      %839 = vmatprep.subr.mxu0 0.0
      %840 = vmatpush1.msra.mxu0 0.0
      %841 = vmatprep.subr.mxu0 0.0
      %842 = vmatpush1.msra.mxu0 0.0
      %843 = vmatprep.subr.mxu0 0.0
      %844 = vmatpush1.msra.mxu0 0.0
      %845 = vmatprep.subr.mxu0 0.0
      %846 = vmatpush1.msra.mxu0 0.0
      %847 = vmatprep.subr.mxu0 0.0
      %848 = vmatpush1.msra.mxu0 0.0
      %849 = vmatprep.subr.mxu0 0.0
      %850 = vmatpush1.msra.mxu0 0.0
      %851 = vmatprep.subr.mxu0 0.0
      %852 = vmatpush1.msra.mxu0 0.0
      %853 = vmatprep.subr.mxu0 0.0
      %854 = vmatpush1.msra.mxu0 0.0
      %855 = vmatprep.subr.mxu0 0.0
      %856 = vmatpush1.msra.mxu0 0.0
      %857 = vmatprep.subr.mxu0 0.0
      %858 = vmatpush1.msra.mxu0 %v593
      %859 = vmatprep.subr.mxu0 0.0
      %860 = vmatpush1.msra.mxu0 %v592
      %861 = vmatprep.subr.mxu0 0.0
      %862 = vmatpush1.msra.mxu0 %v591
      %863 = vmatprep.subr.mxu0 0.0
      %864 = vmatpush1.msra.mxu0 %v590
      %865 = vmatprep.subr.mxu0 0.0
      %866 = vmatpush2.msra.mxu0 0.0
      %867 = vmatprep.subr.mxu0 0.0
      %868 = vmatpush2.msra.mxu0 0.0
      %869 = vmatprep.subr.mxu0 0.0
      %870 = vmatpush2.msra.mxu0 0.0
      %871 = vmatprep.subr.mxu0 0.0
      %872 = vmatpush2.msra.mxu0 0.0
      %873 = vmatprep.subr.mxu0 0.0
      %874 = vmatpush2.msra.mxu0 0.0
      %875 = vmatprep.subr.mxu0 0.0
      %876 = vmatpush2.msra.mxu0 0.0
      %877 = vmatprep.subr.mxu0 0.0
      %878 = vmatpush2.msra.mxu0 0.0
      %879 = vmatprep.subr.mxu0 0.0
      %880 = vmatpush2.msra.mxu0 0.0
      %881 = vmatprep.subr.mxu0 0.0
      %882 = vmatpush2.msra.mxu0 0.0
      %883 = vmatprep.subr.mxu0 0.0
      %884 = vmatpush2.msra.mxu0 0.0
      %885 = vmatprep.subr.mxu0 0.0
      %886 = vmatpush2.msra.mxu0 0.0
      %887 = vmatprep.subr.mxu0 0.0
      %888 = vmatpush2.msra.mxu0 0.0
      %889 = vmatprep.subr.mxu0 0.0
      %890 = vmatpush2.msra.mxu0 0.0
      %891 = vmatprep.subr.mxu0 0.0
      %892 = vmatpush2.msra.mxu0 0.0
      %893 = vmatprep.subr.mxu0 0.0
      %894 = vmatpush2.msra.mxu0 0.0
      %895 = vmatprep.subr.mxu0 0.0
      %896 = vmatpush2.msra.mxu0 0.0
      %897 = vmatprep.mubr.f32.mxu0 0.0
      %898 = vmatmul.mubr.f32.gmra.mxu0 %v295
      %v899 = vpop.f32.mrf.mxu0
      %v900 = vadd.f32 %v618, %v899
      %v901 = vpop.f32.mrf.mxu0
      %902 = vdwg.mxu0
      %s903 = scalar_lea.vmem %s1, 256
      %v904 = vld [vmem:[%s903] sm:$0xff]
      %v905 = vld [vmem:[%s903 + $0x8] sm:$0xff]
      %v906 = vld [vmem:[%s903 + $0x10] sm:$0xff]
      %v907 = vld [vmem:[%s903 + $0x18] sm:$0xff]
      %v908 = vld [vmem:[%s903 + $0x20] sm:$0xff]
      %v909 = vld [vmem:[%s903 + $0x28] sm:$0xff]
      %v910 = vld [vmem:[%s903 + $0x30] sm:$0xff]
      %v911 = vld [vmem:[%s903 + $0x38] sm:$0xff]
      %v912 = vld [vmem:[%s903 + $0x40] sm:$0xff]
      %v913 = vld [vmem:[%s903 + $0x48] sm:$0xff]
      %v914 = vld [vmem:[%s903 + $0x50] sm:$0xff]
      %v915 = vld [vmem:[%s903 + $0x58] sm:$0xff]
      %v916 = vld [vmem:[%s903 + $0x60] sm:$0xff]
      %v917 = vld [vmem:[%s903 + $0x68] sm:$0xff]
      %v918 = vld [vmem:[%s903 + $0x70] sm:$0xff]
      %v919 = vld [vmem:[%s903 + $0x78] sm:$0xff]
      %s920 = scalar_lea.vmem %s2, 8
      %v921 = vld [vmem:[%s920] sm:$0x1]
      %v922 = vld [vmem:[%s920 + $0x1] sm:$0x1]
      %v923 = vld [vmem:[%s920 + $0x2] sm:$0x1]
      %v924 = vld [vmem:[%s920 + $0x3] sm:$0x1]
      %v929 = vlaneseq
      %v930 = vshrl.u32 %v929, 7
      %v931 = vsub.s32 0, %v930
      %v932 = vrot.slane %v921, %v931
      %v933 = vlaneseq
      %v934 = vshrl.u32 %v933, 7
      %v935 = vsub.s32 0, %v934
      %v936 = vrot.slane %v922, %v935
      %v937 = vlaneseq
      %v938 = vshrl.u32 %v937, 7
      %v939 = vsub.s32 0, %v938
      %v940 = vrot.slane %v923, %v939
      %v941 = vlaneseq
      %v942 = vshrl.u32 %v941, 7
      %v943 = vsub.s32 0, %v942
      %v944 = vrot.slane %v924, %v943
      %949 = vmatprep.subr.mxu0 0.0
      %950 = vmatpush1.msra.mxu0 0.0
      %951 = vmatprep.subr.mxu0 0.0
      %952 = vmatpush1.msra.mxu0 0.0
      %953 = vmatprep.subr.mxu0 0.0
      %954 = vmatpush1.msra.mxu0 0.0
      %955 = vmatprep.subr.mxu0 0.0
      %956 = vmatpush1.msra.mxu0 0.0
      %957 = vmatprep.subr.mxu0 0.0
      %958 = vmatpush1.msra.mxu0 0.0
      %959 = vmatprep.subr.mxu0 0.0
      %960 = vmatpush1.msra.mxu0 0.0
      %961 = vmatprep.subr.mxu0 0.0
      %962 = vmatpush1.msra.mxu0 0.0
      %963 = vmatprep.subr.mxu0 0.0
      %964 = vmatpush1.msra.mxu0 0.0
      %965 = vmatprep.subr.mxu0 0.0
      %966 = vmatpush1.msra.mxu0 0.0
      %967 = vmatprep.subr.mxu0 0.0
      %968 = vmatpush1.msra.mxu0 0.0
      %969 = vmatprep.subr.mxu0 0.0
      %970 = vmatpush1.msra.mxu0 0.0
      %971 = vmatprep.subr.mxu0 0.0
      %972 = vmatpush1.msra.mxu0 0.0
      %973 = vmatprep.subr.mxu0 0.0
      %974 = vmatpush1.msra.mxu0 %v907
      %975 = vmatprep.subr.mxu0 0.0
      %976 = vmatpush1.msra.mxu0 %v906
      %977 = vmatprep.subr.mxu0 0.0
      %978 = vmatpush1.msra.mxu0 %v905
      %979 = vmatprep.subr.mxu0 0.0
      %980 = vmatpush1.msra.mxu0 %v904
      %981 = vmatprep.subr.mxu0 0.0
      %982 = vmatpush2.msra.mxu0 0.0
      %983 = vmatprep.subr.mxu0 0.0
      %984 = vmatpush2.msra.mxu0 0.0
      %985 = vmatprep.subr.mxu0 0.0
      %986 = vmatpush2.msra.mxu0 0.0
      %987 = vmatprep.subr.mxu0 0.0
      %988 = vmatpush2.msra.mxu0 0.0
      %989 = vmatprep.subr.mxu0 0.0
      %990 = vmatpush2.msra.mxu0 0.0
      %991 = vmatprep.subr.mxu0 0.0
      %992 = vmatpush2.msra.mxu0 0.0
      %993 = vmatprep.subr.mxu0 0.0
      %994 = vmatpush2.msra.mxu0 0.0
      %995 = vmatprep.subr.mxu0 0.0
      %996 = vmatpush2.msra.mxu0 0.0
      %997 = vmatprep.subr.mxu0 0.0
      %998 = vmatpush2.msra.mxu0 0.0
      %999 = vmatprep.subr.mxu0 0.0
      %1000 = vmatpush2.msra.mxu0 0.0
      %1001 = vmatprep.subr.mxu0 0.0
      %1002 = vmatpush2.msra.mxu0 0.0
      %1003 = vmatprep.subr.mxu0 0.0
      %1004 = vmatpush2.msra.mxu0 0.0
      %1005 = vmatprep.subr.mxu0 0.0
      %1006 = vmatpush2.msra.mxu0 0.0
      %1007 = vmatprep.subr.mxu0 0.0
      %1008 = vmatpush2.msra.mxu0 0.0
      %1009 = vmatprep.subr.mxu0 0.0
      %1010 = vmatpush2.msra.mxu0 0.0
      %1011 = vmatprep.subr.mxu0 0.0
      %1012 = vmatpush2.msra.mxu0 0.0
      %1013 = vmatprep.mubr.f32.mxu0 0.0
      %1014 = vmatmul.mubr.f32.gmra.mxu0 %v295
      %v1015 = vpop.f32.mrf.mxu0
      %v1016 = vadd.f32 %v932, %v1015
      %v1017 = vpop.f32.mrf.mxu0
      %1018 = vdwg.mxu0
      %1019 = vmatprep.subr.mxu0 0.0
      %1020 = vmatpush1.msra.mxu0 0.0
      %1021 = vmatprep.subr.mxu0 0.0
      %1022 = vmatpush1.msra.mxu0 0.0
      %1023 = vmatprep.subr.mxu0 0.0
      %1024 = vmatpush1.msra.mxu0 0.0
      %1025 = vmatprep.subr.mxu0 0.0
      %1026 = vmatpush1.msra.mxu0 0.0
      %1027 = vmatprep.subr.mxu0 0.0
      %1028 = vmatpush1.msra.mxu0 0.0
      %1029 = vmatprep.subr.mxu0 0.0
      %1030 = vmatpush1.msra.mxu0 0.0
      %1031 = vmatprep.subr.mxu0 0.0
      %1032 = vmatpush1.msra.mxu0 0.0
      %1033 = vmatprep.subr.mxu0 0.0
      %1034 = vmatpush1.msra.mxu0 0.0
      %1035 = vmatprep.subr.mxu0 0.0
      %1036 = vmatpush1.msra.mxu0 0.0
      %1037 = vmatprep.subr.mxu0 0.0
      %1038 = vmatpush1.msra.mxu0 0.0
      %1039 = vmatprep.subr.mxu0 0.0
      %1040 = vmatpush1.msra.mxu0 0.0
      %1041 = vmatprep.subr.mxu0 0.0
      %1042 = vmatpush1.msra.mxu0 0.0
      %1043 = vmatprep.subr.mxu0 0.0
      %1044 = vmatpush1.msra.mxu0 %v911
      %1045 = vmatprep.subr.mxu0 0.0
      %1046 = vmatpush1.msra.mxu0 %v910
      %1047 = vmatprep.subr.mxu0 0.0
      %1048 = vmatpush1.msra.mxu0 %v909
      %1049 = vmatprep.subr.mxu0 0.0
      %1050 = vmatpush1.msra.mxu0 %v908
      %1051 = vmatprep.subr.mxu0 0.0
      %1052 = vmatpush2.msra.mxu0 0.0
      %1053 = vmatprep.subr.mxu0 0.0
      %1054 = vmatpush2.msra.mxu0 0.0
      %1055 = vmatprep.subr.mxu0 0.0
      %1056 = vmatpush2.msra.mxu0 0.0
      %1057 = vmatprep.subr.mxu0 0.0
      %1058 = vmatpush2.msra.mxu0 0.0
      %1059 = vmatprep.subr.mxu0 0.0
      %1060 = vmatpush2.msra.mxu0 0.0
      %1061 = vmatprep.subr.mxu0 0.0
      %1062 = vmatpush2.msra.mxu0 0.0
      %1063 = vmatprep.subr.mxu0 0.0
      %1064 = vmatpush2.msra.mxu0 0.0
      %1065 = vmatprep.subr.mxu0 0.0
      %1066 = vmatpush2.msra.mxu0 0.0
      %1067 = vmatprep.subr.mxu0 0.0
      %1068 = vmatpush2.msra.mxu0 0.0
      %1069 = vmatprep.subr.mxu0 0.0
      %1070 = vmatpush2.msra.mxu0 0.0
      %1071 = vmatprep.subr.mxu0 0.0
      %1072 = vmatpush2.msra.mxu0 0.0
      %1073 = vmatprep.subr.mxu0 0.0
      %1074 = vmatpush2.msra.mxu0 0.0
      %1075 = vmatprep.subr.mxu0 0.0
      %1076 = vmatpush2.msra.mxu0 0.0
      %1077 = vmatprep.subr.mxu0 0.0
      %1078 = vmatpush2.msra.mxu0 0.0
      %1079 = vmatprep.subr.mxu0 0.0
      %1080 = vmatpush2.msra.mxu0 0.0
      %1081 = vmatprep.subr.mxu0 0.0
      %1082 = vmatpush2.msra.mxu0 0.0
      %1083 = vmatprep.mubr.f32.mxu0 0.0
      %1084 = vmatmul.mubr.f32.gmra.mxu0 %v295
      %v1085 = vpop.f32.mrf.mxu0
      %v1086 = vadd.f32 %v936, %v1085
      %v1087 = vpop.f32.mrf.mxu0
      %1088 = vdwg.mxu0
      %1089 = vmatprep.subr.mxu0 0.0
      %1090 = vmatpush1.msra.mxu0 0.0
      %1091 = vmatprep.subr.mxu0 0.0
      %1092 = vmatpush1.msra.mxu0 0.0
      %1093 = vmatprep.subr.mxu0 0.0
      %1094 = vmatpush1.msra.mxu0 0.0
      %1095 = vmatprep.subr.mxu0 0.0
      %1096 = vmatpush1.msra.mxu0 0.0
      %1097 = vmatprep.subr.mxu0 0.0
      %1098 = vmatpush1.msra.mxu0 0.0
      %1099 = vmatprep.subr.mxu0 0.0
      %1100 = vmatpush1.msra.mxu0 0.0
      %1101 = vmatprep.subr.mxu0 0.0
      %1102 = vmatpush1.msra.mxu0 0.0
      %1103 = vmatprep.subr.mxu0 0.0
      %1104 = vmatpush1.msra.mxu0 0.0
      %1105 = vmatprep.subr.mxu0 0.0
      %1106 = vmatpush1.msra.mxu0 0.0
      %1107 = vmatprep.subr.mxu0 0.0
      %1108 = vmatpush1.msra.mxu0 0.0
      %1109 = vmatprep.subr.mxu0 0.0
      %1110 = vmatpush1.msra.mxu0 0.0
      %1111 = vmatprep.subr.mxu0 0.0
      %1112 = vmatpush1.msra.mxu0 0.0
      %1113 = vmatprep.subr.mxu0 0.0
      %1114 = vmatpush1.msra.mxu0 %v915
      %1115 = vmatprep.subr.mxu0 0.0
      %1116 = vmatpush1.msra.mxu0 %v914
      %1117 = vmatprep.subr.mxu0 0.0
      %1118 = vmatpush1.msra.mxu0 %v913
      %1119 = vmatprep.subr.mxu0 0.0
      %1120 = vmatpush1.msra.mxu0 %v912
      %1121 = vmatprep.subr.mxu0 0.0
      %1122 = vmatpush2.msra.mxu0 0.0
      %1123 = vmatprep.subr.mxu0 0.0
      %1124 = vmatpush2.msra.mxu0 0.0
      %1125 = vmatprep.subr.mxu0 0.0
      %1126 = vmatpush2.msra.mxu0 0.0
      %1127 = vmatprep.subr.mxu0 0.0
      %1128 = vmatpush2.msra.mxu0 0.0
      %1129 = vmatprep.subr.mxu0 0.0
      %1130 = vmatpush2.msra.mxu0 0.0
      %1131 = vmatprep.subr.mxu0 0.0
      %1132 = vmatpush2.msra.mxu0 0.0
      %1133 = vmatprep.subr.mxu0 0.0
      %1134 = vmatpush2.msra.mxu0 0.0
      %1135 = vmatprep.subr.mxu0 0.0
      %1136 = vmatpush2.msra.mxu0 0.0
      %1137 = vmatprep.subr.mxu0 0.0
      %1138 = vmatpush2.msra.mxu0 0.0
      %1139 = vmatprep.subr.mxu0 0.0
      %1140 = vmatpush2.msra.mxu0 0.0
      %1141 = vmatprep.subr.mxu0 0.0
      %1142 = vmatpush2.msra.mxu0 0.0
      %1143 = vmatprep.subr.mxu0 0.0
      %1144 = vmatpush2.msra.mxu0 0.0
      %1145 = vmatprep.subr.mxu0 0.0
      %1146 = vmatpush2.msra.mxu0 0.0
      %1147 = vmatprep.subr.mxu0 0.0
      %1148 = vmatpush2.msra.mxu0 0.0
      %1149 = vmatprep.subr.mxu0 0.0
      %1150 = vmatpush2.msra.mxu0 0.0
      %1151 = vmatprep.subr.mxu0 0.0
      %1152 = vmatpush2.msra.mxu0 0.0
      %1153 = vmatprep.mubr.f32.mxu0 0.0
      %1154 = vmatmul.mubr.f32.gmra.mxu0 %v295
      %v1155 = vpop.f32.mrf.mxu0
      %v1156 = vadd.f32 %v940, %v1155
      %v1157 = vpop.f32.mrf.mxu0
      %1158 = vdwg.mxu0
      %1159 = vmatprep.subr.mxu0 0.0
      %1160 = vmatpush1.msra.mxu0 0.0
      %1161 = vmatprep.subr.mxu0 0.0
      %1162 = vmatpush1.msra.mxu0 0.0
      %1163 = vmatprep.subr.mxu0 0.0
      %1164 = vmatpush1.msra.mxu0 0.0
      %1165 = vmatprep.subr.mxu0 0.0
      %1166 = vmatpush1.msra.mxu0 0.0
      %1167 = vmatprep.subr.mxu0 0.0
      %1168 = vmatpush1.msra.mxu0 0.0
      %1169 = vmatprep.subr.mxu0 0.0
      %1170 = vmatpush1.msra.mxu0 0.0
      %1171 = vmatprep.subr.mxu0 0.0
      %1172 = vmatpush1.msra.mxu0 0.0
      %1173 = vmatprep.subr.mxu0 0.0
      %1174 = vmatpush1.msra.mxu0 0.0
      %1175 = vmatprep.subr.mxu0 0.0
      %1176 = vmatpush1.msra.mxu0 0.0
      %1177 = vmatprep.subr.mxu0 0.0
      %1178 = vmatpush1.msra.mxu0 0.0
      %1179 = vmatprep.subr.mxu0 0.0
      %1180 = vmatpush1.msra.mxu0 0.0
      %1181 = vmatprep.subr.mxu0 0.0
      %1182 = vmatpush1.msra.mxu0 0.0
      %1183 = vmatprep.subr.mxu0 0.0
      %1184 = vmatpush1.msra.mxu0 %v919
      %1185 = vmatprep.subr.mxu0 0.0
      %1186 = vmatpush1.msra.mxu0 %v918
      %1187 = vmatprep.subr.mxu0 0.0
      %1188 = vmatpush1.msra.mxu0 %v917
      %1189 = vmatprep.subr.mxu0 0.0
      %1190 = vmatpush1.msra.mxu0 %v916
      %1191 = vmatprep.subr.mxu0 0.0
      %1192 = vmatpush2.msra.mxu0 0.0
      %1193 = vmatprep.subr.mxu0 0.0
      %1194 = vmatpush2.msra.mxu0 0.0
      %1195 = vmatprep.subr.mxu0 0.0
      %1196 = vmatpush2.msra.mxu0 0.0
      %1197 = vmatprep.subr.mxu0 0.0
      %1198 = vmatpush2.msra.mxu0 0.0
      %1199 = vmatprep.subr.mxu0 0.0
      %1200 = vmatpush2.msra.mxu0 0.0
      %1201 = vmatprep.subr.mxu0 0.0
      %1202 = vmatpush2.msra.mxu0 0.0
      %1203 = vmatprep.subr.mxu0 0.0
      %1204 = vmatpush2.msra.mxu0 0.0
      %1205 = vmatprep.subr.mxu0 0.0
      %1206 = vmatpush2.msra.mxu0 0.0
      %1207 = vmatprep.subr.mxu0 0.0
      %1208 = vmatpush2.msra.mxu0 0.0
      %1209 = vmatprep.subr.mxu0 0.0
      %1210 = vmatpush2.msra.mxu0 0.0
      %1211 = vmatprep.subr.mxu0 0.0
      %1212 = vmatpush2.msra.mxu0 0.0
      %1213 = vmatprep.subr.mxu0 0.0
      %1214 = vmatpush2.msra.mxu0 0.0
      %1215 = vmatprep.subr.mxu0 0.0
      %1216 = vmatpush2.msra.mxu0 0.0
      %1217 = vmatprep.subr.mxu0 0.0
      %1218 = vmatpush2.msra.mxu0 0.0
      %1219 = vmatprep.subr.mxu0 0.0
      %1220 = vmatpush2.msra.mxu0 0.0
      %1221 = vmatprep.subr.mxu0 0.0
      %1222 = vmatpush2.msra.mxu0 0.0
      %1223 = vmatprep.mubr.f32.mxu0 0.0
      %1224 = vmatmul.mubr.f32.gmra.mxu0 %v295
      %v1225 = vpop.f32.mrf.mxu0
      %v1226 = vadd.f32 %v944, %v1225
      %v1227 = vpop.f32.mrf.mxu0
      %1228 = vdwg.mxu0
      %vm1229 = vcmask 64512
      %v1231 = vsel %vm1229, %v364, 0
      %v1234 = vsel %vm1229, %v690, 0
      %1236 = vmatprep.subr.mxu0 0.0
      %1237 = vmatpush1.xpose.msra.mxu0 0.0
      %1238 = vmatprep.subr.mxu0 0.0
      %1239 = vmatpush1.xpose.msra.mxu0 0.0
      %1240 = vmatprep.subr.mxu0 0.0
      %1241 = vmatpush1.xpose.msra.mxu0 0.0
      %1242 = vmatprep.subr.mxu0 0.0
      %1243 = vmatpush1.xpose.msra.mxu0 0.0
      %1244 = vmatprep.subr.mxu0 0.0
      %1245 = vmatpush1.xpose.msra.mxu0 0.0
      %1246 = vmatprep.subr.mxu0 0.0
      %1247 = vmatpush1.xpose.msra.mxu0 0.0
      %1248 = vmatprep.subr.mxu0 0.0
      %1249 = vmatpush1.xpose.msra.mxu0 0.0
      %1250 = vmatprep.subr.mxu0 0.0
      %1251 = vmatpush1.xpose.msra.mxu0 0.0
      %1252 = vmatprep.subr.mxu0 0.0
      %1253 = vmatpush1.xpose.msra.mxu0 0.0
      %1254 = vmatprep.subr.mxu0 0.0
      %1255 = vmatpush1.xpose.msra.mxu0 0.0
      %1256 = vmatprep.subr.mxu0 0.0
      %1257 = vmatpush1.xpose.msra.mxu0 0.0
      %1258 = vmatprep.subr.mxu0 0.0
      %1259 = vmatpush1.xpose.msra.mxu0 0.0
      %1260 = vmatprep.subr.mxu0 0.0
      %1261 = vmatpush1.xpose.msra.mxu0 0.0
      %1262 = vmatprep.subr.mxu0 0.0
      %1263 = vmatpush1.xpose.msra.mxu0 0.0
      %1264 = vmatprep.subr.mxu0 0.0
      %1265 = vmatpush1.xpose.msra.mxu0 0.0
      %1266 = vmatprep.subr.mxu0 0.0
      %1267 = vmatpush1.xpose.msra.mxu0 %v1234
      %1268 = vmatprep.subr.mxu0 0.0
      %1269 = vmatpush2.xpose.msra.mxu0 0.0
      %1270 = vmatprep.subr.mxu0 0.0
      %1271 = vmatpush2.xpose.msra.mxu0 0.0
      %1272 = vmatprep.subr.mxu0 0.0
      %1273 = vmatpush2.xpose.msra.mxu0 0.0
      %1274 = vmatprep.subr.mxu0 0.0
      %1275 = vmatpush2.xpose.msra.mxu0 0.0
      %1276 = vmatprep.subr.mxu0 0.0
      %1277 = vmatpush2.xpose.msra.mxu0 0.0
      %1278 = vmatprep.subr.mxu0 0.0
      %1279 = vmatpush2.xpose.msra.mxu0 0.0
      %1280 = vmatprep.subr.mxu0 0.0
      %1281 = vmatpush2.xpose.msra.mxu0 0.0
      %1282 = vmatprep.subr.mxu0 0.0
      %1283 = vmatpush2.xpose.msra.mxu0 0.0
      %1284 = vmatprep.subr.mxu0 0.0
      %1285 = vmatpush2.xpose.msra.mxu0 0.0
      %1286 = vmatprep.subr.mxu0 0.0
      %1287 = vmatpush2.xpose.msra.mxu0 0.0
      %1288 = vmatprep.subr.mxu0 0.0
      %1289 = vmatpush2.xpose.msra.mxu0 0.0
      %1290 = vmatprep.subr.mxu0 0.0
      %1291 = vmatpush2.xpose.msra.mxu0 0.0
      %1292 = vmatprep.subr.mxu0 0.0
      %1293 = vmatpush2.xpose.msra.mxu0 0.0
      %1294 = vmatprep.subr.mxu0 0.0
      %1295 = vmatpush2.xpose.msra.mxu0 0.0
      %1296 = vmatprep.subr.mxu0 0.0
      %1297 = vmatpush2.xpose.msra.mxu0 0.0
      %1298 = vmatprep.subr.mxu0 0.0
      %1299 = vmatpush2.xpose.msra.mxu0 0.0
      %1300 = vmatprep.mubr.f32.mxu0 0.0
      %1301 = vmatmul.mubr.f32.gmra.mxu0 %v1231
      %v1302 = vpop.f32.mrf.mxu0
      %v1303 = vadd.f32 0.0, %v1302
      %v1304 = vpop.f32.mrf.mxu0
      %1305 = vdwg.mxu0
      %v1307 = vsel %vm1229, %v434, 0
      %v1310 = vsel %vm1229, %v760, 0
      %1312 = vmatprep.subr.mxu0 0.0
      %1313 = vmatpush1.xpose.msra.mxu0 0.0
      %1314 = vmatprep.subr.mxu0 0.0
      %1315 = vmatpush1.xpose.msra.mxu0 0.0
      %1316 = vmatprep.subr.mxu0 0.0
      %1317 = vmatpush1.xpose.msra.mxu0 0.0
      %1318 = vmatprep.subr.mxu0 0.0
      %1319 = vmatpush1.xpose.msra.mxu0 0.0
      %1320 = vmatprep.subr.mxu0 0.0
      %1321 = vmatpush1.xpose.msra.mxu0 0.0
      %1322 = vmatprep.subr.mxu0 0.0
      %1323 = vmatpush1.xpose.msra.mxu0 0.0
      %1324 = vmatprep.subr.mxu0 0.0
      %1325 = vmatpush1.xpose.msra.mxu0 0.0
      %1326 = vmatprep.subr.mxu0 0.0
      %1327 = vmatpush1.xpose.msra.mxu0 0.0
      %1328 = vmatprep.subr.mxu0 0.0
      %1329 = vmatpush1.xpose.msra.mxu0 0.0
      %1330 = vmatprep.subr.mxu0 0.0
      %1331 = vmatpush1.xpose.msra.mxu0 0.0
      %1332 = vmatprep.subr.mxu0 0.0
      %1333 = vmatpush1.xpose.msra.mxu0 0.0
      %1334 = vmatprep.subr.mxu0 0.0
      %1335 = vmatpush1.xpose.msra.mxu0 0.0
      %1336 = vmatprep.subr.mxu0 0.0
      %1337 = vmatpush1.xpose.msra.mxu0 0.0
      %1338 = vmatprep.subr.mxu0 0.0
      %1339 = vmatpush1.xpose.msra.mxu0 0.0
      %1340 = vmatprep.subr.mxu0 0.0
      %1341 = vmatpush1.xpose.msra.mxu0 0.0
      %1342 = vmatprep.subr.mxu0 0.0
      %1343 = vmatpush1.xpose.msra.mxu0 %v1310
      %1344 = vmatprep.subr.mxu0 0.0
      %1345 = vmatpush2.xpose.msra.mxu0 0.0
      %1346 = vmatprep.subr.mxu0 0.0
      %1347 = vmatpush2.xpose.msra.mxu0 0.0
      %1348 = vmatprep.subr.mxu0 0.0
      %1349 = vmatpush2.xpose.msra.mxu0 0.0
      %1350 = vmatprep.subr.mxu0 0.0
      %1351 = vmatpush2.xpose.msra.mxu0 0.0
      %1352 = vmatprep.subr.mxu0 0.0
      %1353 = vmatpush2.xpose.msra.mxu0 0.0
      %1354 = vmatprep.subr.mxu0 0.0
      %1355 = vmatpush2.xpose.msra.mxu0 0.0
      %1356 = vmatprep.subr.mxu0 0.0
      %1357 = vmatpush2.xpose.msra.mxu0 0.0
      %1358 = vmatprep.subr.mxu0 0.0
      %1359 = vmatpush2.xpose.msra.mxu0 0.0
      %1360 = vmatprep.subr.mxu0 0.0
      %1361 = vmatpush2.xpose.msra.mxu0 0.0
      %1362 = vmatprep.subr.mxu0 0.0
      %1363 = vmatpush2.xpose.msra.mxu0 0.0
      %1364 = vmatprep.subr.mxu0 0.0
      %1365 = vmatpush2.xpose.msra.mxu0 0.0
      %1366 = vmatprep.subr.mxu0 0.0
      %1367 = vmatpush2.xpose.msra.mxu0 0.0
      %1368 = vmatprep.subr.mxu0 0.0
      %1369 = vmatpush2.xpose.msra.mxu0 0.0
      %1370 = vmatprep.subr.mxu0 0.0
      %1371 = vmatpush2.xpose.msra.mxu0 0.0
      %1372 = vmatprep.subr.mxu0 0.0
      %1373 = vmatpush2.xpose.msra.mxu0 0.0
      %1374 = vmatprep.subr.mxu0 0.0
      %1375 = vmatpush2.xpose.msra.mxu0 0.0
      %1376 = vmatprep.mubr.f32.mxu0 0.0
      %1377 = vmatmul.mubr.f32.gmra.mxu0 %v1307
      %v1378 = vpop.f32.mrf.mxu0
      %v1379 = vadd.f32 0.0, %v1378
      %v1380 = vpop.f32.mrf.mxu0
      %1381 = vdwg.mxu0
      %v1383 = vsel %vm1229, %v504, 0
      %v1386 = vsel %vm1229, %v830, 0
      %1388 = vmatprep.subr.mxu0 0.0
      %1389 = vmatpush1.xpose.msra.mxu0 0.0
      %1390 = vmatprep.subr.mxu0 0.0
      %1391 = vmatpush1.xpose.msra.mxu0 0.0
      %1392 = vmatprep.subr.mxu0 0.0
      %1393 = vmatpush1.xpose.msra.mxu0 0.0
      %1394 = vmatprep.subr.mxu0 0.0
      %1395 = vmatpush1.xpose.msra.mxu0 0.0
      %1396 = vmatprep.subr.mxu0 0.0
      %1397 = vmatpush1.xpose.msra.mxu0 0.0
      %1398 = vmatprep.subr.mxu0 0.0
      %1399 = vmatpush1.xpose.msra.mxu0 0.0
      %1400 = vmatprep.subr.mxu0 0.0
      %1401 = vmatpush1.xpose.msra.mxu0 0.0
      %1402 = vmatprep.subr.mxu0 0.0
      %1403 = vmatpush1.xpose.msra.mxu0 0.0
      %1404 = vmatprep.subr.mxu0 0.0
      %1405 = vmatpush1.xpose.msra.mxu0 0.0
      %1406 = vmatprep.subr.mxu0 0.0
      %1407 = vmatpush1.xpose.msra.mxu0 0.0
      %1408 = vmatprep.subr.mxu0 0.0
      %1409 = vmatpush1.xpose.msra.mxu0 0.0
      %1410 = vmatprep.subr.mxu0 0.0
      %1411 = vmatpush1.xpose.msra.mxu0 0.0
      %1412 = vmatprep.subr.mxu0 0.0
      %1413 = vmatpush1.xpose.msra.mxu0 0.0
      %1414 = vmatprep.subr.mxu0 0.0
      %1415 = vmatpush1.xpose.msra.mxu0 0.0
      %1416 = vmatprep.subr.mxu0 0.0
      %1417 = vmatpush1.xpose.msra.mxu0 0.0
      %1418 = vmatprep.subr.mxu0 0.0
      %1419 = vmatpush1.xpose.msra.mxu0 %v1386
      %1420 = vmatprep.subr.mxu0 0.0
      %1421 = vmatpush2.xpose.msra.mxu0 0.0
      %1422 = vmatprep.subr.mxu0 0.0
      %1423 = vmatpush2.xpose.msra.mxu0 0.0
      %1424 = vmatprep.subr.mxu0 0.0
      %1425 = vmatpush2.xpose.msra.mxu0 0.0
      %1426 = vmatprep.subr.mxu0 0.0
      %1427 = vmatpush2.xpose.msra.mxu0 0.0
      %1428 = vmatprep.subr.mxu0 0.0
      %1429 = vmatpush2.xpose.msra.mxu0 0.0
      %1430 = vmatprep.subr.mxu0 0.0
      %1431 = vmatpush2.xpose.msra.mxu0 0.0
      %1432 = vmatprep.subr.mxu0 0.0
      %1433 = vmatpush2.xpose.msra.mxu0 0.0
      %1434 = vmatprep.subr.mxu0 0.0
      %1435 = vmatpush2.xpose.msra.mxu0 0.0
      %1436 = vmatprep.subr.mxu0 0.0
      %1437 = vmatpush2.xpose.msra.mxu0 0.0
      %1438 = vmatprep.subr.mxu0 0.0
      %1439 = vmatpush2.xpose.msra.mxu0 0.0
      %1440 = vmatprep.subr.mxu0 0.0
      %1441 = vmatpush2.xpose.msra.mxu0 0.0
      %1442 = vmatprep.subr.mxu0 0.0
      %1443 = vmatpush2.xpose.msra.mxu0 0.0
      %1444 = vmatprep.subr.mxu0 0.0
      %1445 = vmatpush2.xpose.msra.mxu0 0.0
      %1446 = vmatprep.subr.mxu0 0.0
      %1447 = vmatpush2.xpose.msra.mxu0 0.0
      %1448 = vmatprep.subr.mxu0 0.0
      %1449 = vmatpush2.xpose.msra.mxu0 0.0
      %1450 = vmatprep.subr.mxu0 0.0
      %1451 = vmatpush2.xpose.msra.mxu0 0.0
      %1452 = vmatprep.mubr.f32.mxu0 0.0
      %1453 = vmatmul.mubr.f32.gmra.mxu0 %v1383
      %v1454 = vpop.f32.mrf.mxu0
      %v1455 = vadd.f32 0.0, %v1454
      %v1456 = vpop.f32.mrf.mxu0
      %1457 = vdwg.mxu0
      %v1459 = vsel %vm1229, %v574, 0
      %v1462 = vsel %vm1229, %v900, 0
      %1464 = vmatprep.subr.mxu0 0.0
      %1465 = vmatpush1.xpose.msra.mxu0 0.0
      %1466 = vmatprep.subr.mxu0 0.0
      %1467 = vmatpush1.xpose.msra.mxu0 0.0
      %1468 = vmatprep.subr.mxu0 0.0
      %1469 = vmatpush1.xpose.msra.mxu0 0.0
      %1470 = vmatprep.subr.mxu0 0.0
      %1471 = vmatpush1.xpose.msra.mxu0 0.0
      %1472 = vmatprep.subr.mxu0 0.0
      %1473 = vmatpush1.xpose.msra.mxu0 0.0
      %1474 = vmatprep.subr.mxu0 0.0
      %1475 = vmatpush1.xpose.msra.mxu0 0.0
      %1476 = vmatprep.subr.mxu0 0.0
      %1477 = vmatpush1.xpose.msra.mxu0 0.0
      %1478 = vmatprep.subr.mxu0 0.0
      %1479 = vmatpush1.xpose.msra.mxu0 0.0
      %1480 = vmatprep.subr.mxu0 0.0
      %1481 = vmatpush1.xpose.msra.mxu0 0.0
      %1482 = vmatprep.subr.mxu0 0.0
      %1483 = vmatpush1.xpose.msra.mxu0 0.0
      %1484 = vmatprep.subr.mxu0 0.0
      %1485 = vmatpush1.xpose.msra.mxu0 0.0
      %1486 = vmatprep.subr.mxu0 0.0
      %1487 = vmatpush1.xpose.msra.mxu0 0.0
      %1488 = vmatprep.subr.mxu0 0.0
      %1489 = vmatpush1.xpose.msra.mxu0 0.0
      %1490 = vmatprep.subr.mxu0 0.0
      %1491 = vmatpush1.xpose.msra.mxu0 0.0
      %1492 = vmatprep.subr.mxu0 0.0
      %1493 = vmatpush1.xpose.msra.mxu0 0.0
      %1494 = vmatprep.subr.mxu0 0.0
      %1495 = vmatpush1.xpose.msra.mxu0 %v1462
      %1496 = vmatprep.subr.mxu0 0.0
      %1497 = vmatpush2.xpose.msra.mxu0 0.0
      %1498 = vmatprep.subr.mxu0 0.0
      %1499 = vmatpush2.xpose.msra.mxu0 0.0
      %1500 = vmatprep.subr.mxu0 0.0
      %1501 = vmatpush2.xpose.msra.mxu0 0.0
      %1502 = vmatprep.subr.mxu0 0.0
      %1503 = vmatpush2.xpose.msra.mxu0 0.0
      %1504 = vmatprep.subr.mxu0 0.0
      %1505 = vmatpush2.xpose.msra.mxu0 0.0
      %1506 = vmatprep.subr.mxu0 0.0
      %1507 = vmatpush2.xpose.msra.mxu0 0.0
      %1508 = vmatprep.subr.mxu0 0.0
      %1509 = vmatpush2.xpose.msra.mxu0 0.0
      %1510 = vmatprep.subr.mxu0 0.0
      %1511 = vmatpush2.xpose.msra.mxu0 0.0
      %1512 = vmatprep.subr.mxu0 0.0
      %1513 = vmatpush2.xpose.msra.mxu0 0.0
      %1514 = vmatprep.subr.mxu0 0.0
      %1515 = vmatpush2.xpose.msra.mxu0 0.0
      %1516 = vmatprep.subr.mxu0 0.0
      %1517 = vmatpush2.xpose.msra.mxu0 0.0
      %1518 = vmatprep.subr.mxu0 0.0
      %1519 = vmatpush2.xpose.msra.mxu0 0.0
      %1520 = vmatprep.subr.mxu0 0.0
      %1521 = vmatpush2.xpose.msra.mxu0 0.0
      %1522 = vmatprep.subr.mxu0 0.0
      %1523 = vmatpush2.xpose.msra.mxu0 0.0
      %1524 = vmatprep.subr.mxu0 0.0
      %1525 = vmatpush2.xpose.msra.mxu0 0.0
      %1526 = vmatprep.subr.mxu0 0.0
      %1527 = vmatpush2.xpose.msra.mxu0 0.0
      %1528 = vmatprep.mubr.f32.mxu0 0.0
      %1529 = vmatmul.mubr.f32.gmra.mxu0 %v1459
      %v1530 = vpop.f32.mrf.mxu0
      %v1531 = vadd.f32 0.0, %v1530
      %v1532 = vpop.f32.mrf.mxu0
      %1533 = vdwg.mxu0
      %v1534 = vsel %vm1229, %v1303, -inf
      %1535 = vmax.xlane.f32.xlu0 %v1534
      %v1536 = vpop.xlane.xlu0 %1535
      %v1537 = vsel %vm1229, %v1379, -inf
      %1538 = vmax.xlane.f32.xlu0 %v1537
      %v1539 = vpop.xlane.xlu0 %1538
      %v1540 = vsel %vm1229, %v1455, -inf
      %1541 = vmax.xlane.f32.xlu0 %v1540
      %v1542 = vpop.xlane.xlu0 %1541
      %v1543 = vsel %vm1229, %v1531, -inf
      %1544 = vmax.xlane.f32.xlu0 %v1543
      %v1545 = vpop.xlane.xlu0 %1544
      %v1546 = vsub.f32 %v1303, %v1536
      %v1547 = vsub.f32 %v1379, %v1539
      %v1548 = vsub.f32 %v1455, %v1542
      %v1549 = vsub.f32 %v1531, %v1545
      %v1550 = vmul.f32 %v1546, 1.442695
      %v1551 = vpow.pop %v1550
      %v1552 = vmul.f32 %v1547, 1.442695
      %v1553 = vpow.pop %v1552
      %v1554 = vmul.f32 %v1548, 1.442695
      %v1555 = vpow.pop %v1554
      %v1556 = vmul.f32 %v1549, 1.442695
      %v1557 = vpow.pop %v1556
      %v1558 = vsel %vm1229, %v1551, 0.0
      %1559 = vadd.xlane.f32.xlu0 %v1558
      %v1560 = vpop.xlane.xlu0 %1559
      %v1561 = vsel %vm1229, %v1553, 0.0
      %1562 = vadd.xlane.f32.xlu0 %v1561
      %v1563 = vpop.xlane.xlu0 %1562
      %v1564 = vsel %vm1229, %v1555, 0.0
      %1565 = vadd.xlane.f32.xlu0 %v1564
      %v1566 = vpop.xlane.xlu0 %1565
      %v1567 = vsel %vm1229, %v1557, 0.0
      %1568 = vadd.xlane.f32.xlu0 %v1567
      %v1569 = vpop.xlane.xlu0 %1568
      %v1570 = vrcp.pop %v1560
      %v1571 = vmul.f32 %v1551, %v1570
      %v1572 = vrcp.pop %v1563
      %v1573 = vmul.f32 %v1553, %v1572
      %v1574 = vrcp.pop %v1566
      %v1575 = vmul.f32 %v1555, %v1574
      %v1576 = vrcp.pop %v1569
      %v1577 = vmul.f32 %v1557, %v1576
      %v1579 = vsel %vm1229, %v1571, 0
      %1581 = vmatprep.subr.mxu0 0.0
      %1582 = vmatpush1.msra.mxu0 0.0
      %1583 = vmatprep.subr.mxu0 0.0
      %1584 = vmatpush1.msra.mxu0 0.0
      %1585 = vmatprep.subr.mxu0 0.0
      %1586 = vmatpush1.msra.mxu0 0.0
      %1587 = vmatprep.subr.mxu0 0.0
      %1588 = vmatpush1.msra.mxu0 0.0
      %1589 = vmatprep.subr.mxu0 0.0
      %1590 = vmatpush1.msra.mxu0 0.0
      %1591 = vmatprep.subr.mxu0 0.0
      %1592 = vmatpush1.msra.mxu0 0.0
      %1593 = vmatprep.subr.mxu0 0.0
      %1594 = vmatpush1.msra.mxu0 0.0
      %1595 = vmatprep.subr.mxu0 0.0
      %1596 = vmatpush1.msra.mxu0 0.0
      %1597 = vmatprep.subr.mxu0 0.0
      %1598 = vmatpush1.msra.mxu0 0.0
      %1599 = vmatprep.subr.mxu0 0.0
      %1600 = vmatpush1.msra.mxu0 0.0
      %1601 = vmatprep.subr.mxu0 0.0
      %1602 = vmatpush1.msra.mxu0 0.0
      %1603 = vmatprep.subr.mxu0 0.0
      %1604 = vmatpush1.msra.mxu0 0.0
      %1605 = vmatprep.subr.mxu0 0.0
      %1606 = vmatpush1.msra.mxu0 0.0
      %1607 = vmatprep.subr.mxu0 0.0
      %1608 = vmatpush1.msra.mxu0 0.0
      %1609 = vmatprep.subr.mxu0 0.0
      %1610 = vmatpush1.msra.mxu0 0.0
      %1611 = vmatprep.subr.mxu0 0.0
      %1612 = vmatpush1.msra.mxu0 %v1016
      %1613 = vmatprep.subr.mxu0 0.0
      %1614 = vmatpush2.msra.mxu0 0.0
      %1615 = vmatprep.subr.mxu0 0.0
      %1616 = vmatpush2.msra.mxu0 0.0
      %1617 = vmatprep.subr.mxu0 0.0
      %1618 = vmatpush2.msra.mxu0 0.0
      %1619 = vmatprep.subr.mxu0 0.0
      %1620 = vmatpush2.msra.mxu0 0.0
      %1621 = vmatprep.subr.mxu0 0.0
      %1622 = vmatpush2.msra.mxu0 0.0
      %1623 = vmatprep.subr.mxu0 0.0
      %1624 = vmatpush2.msra.mxu0 0.0
      %1625 = vmatprep.subr.mxu0 0.0
      %1626 = vmatpush2.msra.mxu0 0.0
      %1627 = vmatprep.subr.mxu0 0.0
      %1628 = vmatpush2.msra.mxu0 0.0
      %1629 = vmatprep.subr.mxu0 0.0
      %1630 = vmatpush2.msra.mxu0 0.0
      %1631 = vmatprep.subr.mxu0 0.0
      %1632 = vmatpush2.msra.mxu0 0.0
      %1633 = vmatprep.subr.mxu0 0.0
      %1634 = vmatpush2.msra.mxu0 0.0
      %1635 = vmatprep.subr.mxu0 0.0
      %1636 = vmatpush2.msra.mxu0 0.0
      %1637 = vmatprep.subr.mxu0 0.0
      %1638 = vmatpush2.msra.mxu0 0.0
      %1639 = vmatprep.subr.mxu0 0.0
      %1640 = vmatpush2.msra.mxu0 0.0
      %1641 = vmatprep.subr.mxu0 0.0
      %1642 = vmatpush2.msra.mxu0 0.0
      %1643 = vmatprep.subr.mxu0 0.0
      %1644 = vmatpush2.msra.mxu0 0.0
      %1645 = vmatprep.mubr.f32.mxu0 0.0
      %1646 = vmatmul.mubr.f32.gmra.mxu0 %v1579
      %v1647 = vpop.f32.mrf.mxu0
      %v1648 = vadd.f32 0.0, %v1647
      %v1649 = vpop.f32.mrf.mxu0
      %1650 = vdwg.mxu0
      %v1652 = vsel %vm1229, %v1573, 0
      %1654 = vmatprep.subr.mxu0 0.0
      %1655 = vmatpush1.msra.mxu0 0.0
      %1656 = vmatprep.subr.mxu0 0.0
      %1657 = vmatpush1.msra.mxu0 0.0
      %1658 = vmatprep.subr.mxu0 0.0
      %1659 = vmatpush1.msra.mxu0 0.0
      %1660 = vmatprep.subr.mxu0 0.0
      %1661 = vmatpush1.msra.mxu0 0.0
      %1662 = vmatprep.subr.mxu0 0.0
      %1663 = vmatpush1.msra.mxu0 0.0
      %1664 = vmatprep.subr.mxu0 0.0
      %1665 = vmatpush1.msra.mxu0 0.0
      %1666 = vmatprep.subr.mxu0 0.0
      %1667 = vmatpush1.msra.mxu0 0.0
      %1668 = vmatprep.subr.mxu0 0.0
      %1669 = vmatpush1.msra.mxu0 0.0
      %1670 = vmatprep.subr.mxu0 0.0
      %1671 = vmatpush1.msra.mxu0 0.0
      %1672 = vmatprep.subr.mxu0 0.0
      %1673 = vmatpush1.msra.mxu0 0.0
      %1674 = vmatprep.subr.mxu0 0.0
      %1675 = vmatpush1.msra.mxu0 0.0
      %1676 = vmatprep.subr.mxu0 0.0
      %1677 = vmatpush1.msra.mxu0 0.0
      %1678 = vmatprep.subr.mxu0 0.0
      %1679 = vmatpush1.msra.mxu0 0.0
      %1680 = vmatprep.subr.mxu0 0.0
      %1681 = vmatpush1.msra.mxu0 0.0
      %1682 = vmatprep.subr.mxu0 0.0
      %1683 = vmatpush1.msra.mxu0 0.0
      %1684 = vmatprep.subr.mxu0 0.0
      %1685 = vmatpush1.msra.mxu0 %v1086
      %1686 = vmatprep.subr.mxu0 0.0
      %1687 = vmatpush2.msra.mxu0 0.0
      %1688 = vmatprep.subr.mxu0 0.0
      %1689 = vmatpush2.msra.mxu0 0.0
      %1690 = vmatprep.subr.mxu0 0.0
      %1691 = vmatpush2.msra.mxu0 0.0
      %1692 = vmatprep.subr.mxu0 0.0
      %1693 = vmatpush2.msra.mxu0 0.0
      %1694 = vmatprep.subr.mxu0 0.0
      %1695 = vmatpush2.msra.mxu0 0.0
      %1696 = vmatprep.subr.mxu0 0.0
      %1697 = vmatpush2.msra.mxu0 0.0
      %1698 = vmatprep.subr.mxu0 0.0
      %1699 = vmatpush2.msra.mxu0 0.0
      %1700 = vmatprep.subr.mxu0 0.0
      %1701 = vmatpush2.msra.mxu0 0.0
      %1702 = vmatprep.subr.mxu0 0.0
      %1703 = vmatpush2.msra.mxu0 0.0
      %1704 = vmatprep.subr.mxu0 0.0
      %1705 = vmatpush2.msra.mxu0 0.0
      %1706 = vmatprep.subr.mxu0 0.0
      %1707 = vmatpush2.msra.mxu0 0.0
      %1708 = vmatprep.subr.mxu0 0.0
      %1709 = vmatpush2.msra.mxu0 0.0
      %1710 = vmatprep.subr.mxu0 0.0
      %1711 = vmatpush2.msra.mxu0 0.0
      %1712 = vmatprep.subr.mxu0 0.0
      %1713 = vmatpush2.msra.mxu0 0.0
      %1714 = vmatprep.subr.mxu0 0.0
      %1715 = vmatpush2.msra.mxu0 0.0
      %1716 = vmatprep.subr.mxu0 0.0
      %1717 = vmatpush2.msra.mxu0 0.0
      %1718 = vmatprep.mubr.f32.mxu0 0.0
      %1719 = vmatmul.mubr.f32.gmra.mxu0 %v1652
      %v1720 = vpop.f32.mrf.mxu0
      %v1721 = vadd.f32 0.0, %v1720
      %v1722 = vpop.f32.mrf.mxu0
      %1723 = vdwg.mxu0
      %v1725 = vsel %vm1229, %v1575, 0
      %1727 = vmatprep.subr.mxu0 0.0
      %1728 = vmatpush1.msra.mxu0 0.0
      %1729 = vmatprep.subr.mxu0 0.0
      %1730 = vmatpush1.msra.mxu0 0.0
      %1731 = vmatprep.subr.mxu0 0.0
      %1732 = vmatpush1.msra.mxu0 0.0
      %1733 = vmatprep.subr.mxu0 0.0
      %1734 = vmatpush1.msra.mxu0 0.0
      %1735 = vmatprep.subr.mxu0 0.0
      %1736 = vmatpush1.msra.mxu0 0.0
      %1737 = vmatprep.subr.mxu0 0.0
      %1738 = vmatpush1.msra.mxu0 0.0
      %1739 = vmatprep.subr.mxu0 0.0
      %1740 = vmatpush1.msra.mxu0 0.0
      %1741 = vmatprep.subr.mxu0 0.0
      %1742 = vmatpush1.msra.mxu0 0.0
      %1743 = vmatprep.subr.mxu0 0.0
      %1744 = vmatpush1.msra.mxu0 0.0
      %1745 = vmatprep.subr.mxu0 0.0
      %1746 = vmatpush1.msra.mxu0 0.0
      %1747 = vmatprep.subr.mxu0 0.0
      %1748 = vmatpush1.msra.mxu0 0.0
      %1749 = vmatprep.subr.mxu0 0.0
      %1750 = vmatpush1.msra.mxu0 0.0
      %1751 = vmatprep.subr.mxu0 0.0
      %1752 = vmatpush1.msra.mxu0 0.0
      %1753 = vmatprep.subr.mxu0 0.0
      %1754 = vmatpush1.msra.mxu0 0.0
      %1755 = vmatprep.subr.mxu0 0.0
      %1756 = vmatpush1.msra.mxu0 0.0
      %1757 = vmatprep.subr.mxu0 0.0
      %1758 = vmatpush1.msra.mxu0 %v1156
      %1759 = vmatprep.subr.mxu0 0.0
      %1760 = vmatpush2.msra.mxu0 0.0
      %1761 = vmatprep.subr.mxu0 0.0
      %1762 = vmatpush2.msra.mxu0 0.0
      %1763 = vmatprep.subr.mxu0 0.0
      %1764 = vmatpush2.msra.mxu0 0.0
      %1765 = vmatprep.subr.mxu0 0.0
      %1766 = vmatpush2.msra.mxu0 0.0
      %1767 = vmatprep.subr.mxu0 0.0
      %1768 = vmatpush2.msra.mxu0 0.0
      %1769 = vmatprep.subr.mxu0 0.0
      %1770 = vmatpush2.msra.mxu0 0.0
      %1771 = vmatprep.subr.mxu0 0.0
      %1772 = vmatpush2.msra.mxu0 0.0
      %1773 = vmatprep.subr.mxu0 0.0
      %1774 = vmatpush2.msra.mxu0 0.0
      %1775 = vmatprep.subr.mxu0 0.0
      %1776 = vmatpush2.msra.mxu0 0.0
      %1777 = vmatprep.subr.mxu0 0.0
      %1778 = vmatpush2.msra.mxu0 0.0
      %1779 = vmatprep.subr.mxu0 0.0
      %1780 = vmatpush2.msra.mxu0 0.0
      %1781 = vmatprep.subr.mxu0 0.0
      %1782 = vmatpush2.msra.mxu0 0.0
      %1783 = vmatprep.subr.mxu0 0.0
      %1784 = vmatpush2.msra.mxu0 0.0
      %1785 = vmatprep.subr.mxu0 0.0
      %1786 = vmatpush2.msra.mxu0 0.0
      %1787 = vmatprep.subr.mxu0 0.0
      %1788 = vmatpush2.msra.mxu0 0.0
      %1789 = vmatprep.subr.mxu0 0.0
      %1790 = vmatpush2.msra.mxu0 0.0
      %1791 = vmatprep.mubr.f32.mxu0 0.0
      %1792 = vmatmul.mubr.f32.gmra.mxu0 %v1725
      %v1793 = vpop.f32.mrf.mxu0
      %v1794 = vadd.f32 0.0, %v1793
      %v1795 = vpop.f32.mrf.mxu0
      %1796 = vdwg.mxu0
      %v1798 = vsel %vm1229, %v1577, 0
      %1800 = vmatprep.subr.mxu0 0.0
      %1801 = vmatpush1.msra.mxu0 0.0
      %1802 = vmatprep.subr.mxu0 0.0
      %1803 = vmatpush1.msra.mxu0 0.0
      %1804 = vmatprep.subr.mxu0 0.0
      %1805 = vmatpush1.msra.mxu0 0.0
      %1806 = vmatprep.subr.mxu0 0.0
      %1807 = vmatpush1.msra.mxu0 0.0
      %1808 = vmatprep.subr.mxu0 0.0
      %1809 = vmatpush1.msra.mxu0 0.0
      %1810 = vmatprep.subr.mxu0 0.0
      %1811 = vmatpush1.msra.mxu0 0.0
      %1812 = vmatprep.subr.mxu0 0.0
      %1813 = vmatpush1.msra.mxu0 0.0
      %1814 = vmatprep.subr.mxu0 0.0
      %1815 = vmatpush1.msra.mxu0 0.0
      %1816 = vmatprep.subr.mxu0 0.0
      %1817 = vmatpush1.msra.mxu0 0.0
      %1818 = vmatprep.subr.mxu0 0.0
      %1819 = vmatpush1.msra.mxu0 0.0
      %1820 = vmatprep.subr.mxu0 0.0
      %1821 = vmatpush1.msra.mxu0 0.0
      %1822 = vmatprep.subr.mxu0 0.0
      %1823 = vmatpush1.msra.mxu0 0.0
      %1824 = vmatprep.subr.mxu0 0.0
      %1825 = vmatpush1.msra.mxu0 0.0
      %1826 = vmatprep.subr.mxu0 0.0
      %1827 = vmatpush1.msra.mxu0 0.0
      %1828 = vmatprep.subr.mxu0 0.0
      %1829 = vmatpush1.msra.mxu0 0.0
      %1830 = vmatprep.subr.mxu0 0.0
      %1831 = vmatpush1.msra.mxu0 %v1226
      %1832 = vmatprep.subr.mxu0 0.0
      %1833 = vmatpush2.msra.mxu0 0.0
      %1834 = vmatprep.subr.mxu0 0.0
      %1835 = vmatpush2.msra.mxu0 0.0
      %1836 = vmatprep.subr.mxu0 0.0
      %1837 = vmatpush2.msra.mxu0 0.0
      %1838 = vmatprep.subr.mxu0 0.0
      %1839 = vmatpush2.msra.mxu0 0.0
      %1840 = vmatprep.subr.mxu0 0.0
      %1841 = vmatpush2.msra.mxu0 0.0
      %1842 = vmatprep.subr.mxu0 0.0
      %1843 = vmatpush2.msra.mxu0 0.0
      %1844 = vmatprep.subr.mxu0 0.0
      %1845 = vmatpush2.msra.mxu0 0.0
      %1846 = vmatprep.subr.mxu0 0.0
      %1847 = vmatpush2.msra.mxu0 0.0
      %1848 = vmatprep.subr.mxu0 0.0
      %1849 = vmatpush2.msra.mxu0 0.0
      %1850 = vmatprep.subr.mxu0 0.0
      %1851 = vmatpush2.msra.mxu0 0.0
      %1852 = vmatprep.subr.mxu0 0.0
      %1853 = vmatpush2.msra.mxu0 0.0
      %1854 = vmatprep.subr.mxu0 0.0
      %1855 = vmatpush2.msra.mxu0 0.0
      %1856 = vmatprep.subr.mxu0 0.0
      %1857 = vmatpush2.msra.mxu0 0.0
      %1858 = vmatprep.subr.mxu0 0.0
      %1859 = vmatpush2.msra.mxu0 0.0
      %1860 = vmatprep.subr.mxu0 0.0
      %1861 = vmatpush2.msra.mxu0 0.0
      %1862 = vmatprep.subr.mxu0 0.0
      %1863 = vmatpush2.msra.mxu0 0.0
      %1864 = vmatprep.mubr.f32.mxu0 0.0
      %1865 = vmatmul.mubr.f32.gmra.mxu0 %v1798
      %v1866 = vpop.f32.mrf.mxu0
      %v1867 = vadd.f32 0.0, %v1866
      %v1868 = vpop.f32.mrf.mxu0
      %1869 = vdwg.mxu0
      %v1870 = vld [vmem:[%s3] sm:$0xff]
      %v1871 = vld [vmem:[%s3 + $0x8] sm:$0xff]
      %v1872 = vld [vmem:[%s3 + $0x10] sm:$0xff]
      %v1873 = vld [vmem:[%s3 + $0x18] sm:$0xff]
      %v1875 = vsel %vm1229, %v1648, 0
      %1877 = vmatprep.subr.mxu0 0.0
      %1878 = vmatpush1.msra.mxu0 0.0
      %1879 = vmatprep.subr.mxu0 0.0
      %1880 = vmatpush1.msra.mxu0 0.0
      %1881 = vmatprep.subr.mxu0 0.0
      %1882 = vmatpush1.msra.mxu0 0.0
      %1883 = vmatprep.subr.mxu0 0.0
      %1884 = vmatpush1.msra.mxu0 0.0
      %1885 = vmatprep.subr.mxu0 0.0
      %1886 = vmatpush1.msra.mxu0 0.0
      %1887 = vmatprep.subr.mxu0 0.0
      %1888 = vmatpush1.msra.mxu0 0.0
      %1889 = vmatprep.subr.mxu0 0.0
      %1890 = vmatpush1.msra.mxu0 0.0
      %1891 = vmatprep.subr.mxu0 0.0
      %1892 = vmatpush1.msra.mxu0 0.0
      %1893 = vmatprep.subr.mxu0 0.0
      %1894 = vmatpush1.msra.mxu0 0.0
      %1895 = vmatprep.subr.mxu0 0.0
      %1896 = vmatpush1.msra.mxu0 0.0
      %1897 = vmatprep.subr.mxu0 0.0
      %1898 = vmatpush1.msra.mxu0 0.0
      %1899 = vmatprep.subr.mxu0 0.0
      %1900 = vmatpush1.msra.mxu0 0.0
      %1901 = vmatprep.subr.mxu0 0.0
      %1902 = vmatpush1.msra.mxu0 0.0
      %1903 = vmatprep.subr.mxu0 0.0
      %1904 = vmatpush1.msra.mxu0 0.0
      %1905 = vmatprep.subr.mxu0 0.0
      %1906 = vmatpush1.msra.mxu0 0.0
      %1907 = vmatprep.subr.mxu0 0.0
      %1908 = vmatpush1.msra.mxu0 %v1870
      %1909 = vmatprep.subr.mxu0 0.0
      %1910 = vmatpush2.msra.mxu0 0.0
      %1911 = vmatprep.subr.mxu0 0.0
      %1912 = vmatpush2.msra.mxu0 0.0
      %1913 = vmatprep.subr.mxu0 0.0
      %1914 = vmatpush2.msra.mxu0 0.0
      %1915 = vmatprep.subr.mxu0 0.0
      %1916 = vmatpush2.msra.mxu0 0.0
      %1917 = vmatprep.subr.mxu0 0.0
      %1918 = vmatpush2.msra.mxu0 0.0
      %1919 = vmatprep.subr.mxu0 0.0
      %1920 = vmatpush2.msra.mxu0 0.0
      %1921 = vmatprep.subr.mxu0 0.0
      %1922 = vmatpush2.msra.mxu0 0.0
      %1923 = vmatprep.subr.mxu0 0.0
      %1924 = vmatpush2.msra.mxu0 0.0
      %1925 = vmatprep.subr.mxu0 0.0
      %1926 = vmatpush2.msra.mxu0 0.0
      %1927 = vmatprep.subr.mxu0 0.0
      %1928 = vmatpush2.msra.mxu0 0.0
      %1929 = vmatprep.subr.mxu0 0.0
      %1930 = vmatpush2.msra.mxu0 0.0
      %1931 = vmatprep.subr.mxu0 0.0
      %1932 = vmatpush2.msra.mxu0 0.0
      %1933 = vmatprep.subr.mxu0 0.0
      %1934 = vmatpush2.msra.mxu0 0.0
      %1935 = vmatprep.subr.mxu0 0.0
      %1936 = vmatpush2.msra.mxu0 0.0
      %1937 = vmatprep.subr.mxu0 0.0
      %1938 = vmatpush2.msra.mxu0 0.0
      %1939 = vmatprep.subr.mxu0 0.0
      %1940 = vmatpush2.msra.mxu0 0.0
      %1941 = vmatprep.mubr.f32.mxu0 0.0
      %1942 = vmatmul.mubr.f32.gmra.mxu0 %v1875
      %v1943 = vpop.f32.mrf.mxu0
      %v1944 = vadd.f32 0.0, %v1943
      %v1945 = vpop.f32.mrf.mxu0
      %1946 = vdwg.mxu0
      %v1948 = vsel %vm1229, %v1721, 0
      %1950 = vmatprep.subr.mxu0 0.0
      %1951 = vmatpush1.msra.mxu0 0.0
      %1952 = vmatprep.subr.mxu0 0.0
      %1953 = vmatpush1.msra.mxu0 0.0
      %1954 = vmatprep.subr.mxu0 0.0
      %1955 = vmatpush1.msra.mxu0 0.0
      %1956 = vmatprep.subr.mxu0 0.0
      %1957 = vmatpush1.msra.mxu0 0.0
      %1958 = vmatprep.subr.mxu0 0.0
      %1959 = vmatpush1.msra.mxu0 0.0
      %1960 = vmatprep.subr.mxu0 0.0
      %1961 = vmatpush1.msra.mxu0 0.0
      %1962 = vmatprep.subr.mxu0 0.0
      %1963 = vmatpush1.msra.mxu0 0.0
      %1964 = vmatprep.subr.mxu0 0.0
      %1965 = vmatpush1.msra.mxu0 0.0
      %1966 = vmatprep.subr.mxu0 0.0
      %1967 = vmatpush1.msra.mxu0 0.0
      %1968 = vmatprep.subr.mxu0 0.0
      %1969 = vmatpush1.msra.mxu0 0.0
      %1970 = vmatprep.subr.mxu0 0.0
      %1971 = vmatpush1.msra.mxu0 0.0
      %1972 = vmatprep.subr.mxu0 0.0
      %1973 = vmatpush1.msra.mxu0 0.0
      %1974 = vmatprep.subr.mxu0 0.0
      %1975 = vmatpush1.msra.mxu0 0.0
      %1976 = vmatprep.subr.mxu0 0.0
      %1977 = vmatpush1.msra.mxu0 0.0
      %1978 = vmatprep.subr.mxu0 0.0
      %1979 = vmatpush1.msra.mxu0 0.0
      %1980 = vmatprep.subr.mxu0 0.0
      %1981 = vmatpush1.msra.mxu0 %v1871
      %1982 = vmatprep.subr.mxu0 0.0
      %1983 = vmatpush2.msra.mxu0 0.0
      %1984 = vmatprep.subr.mxu0 0.0
      %1985 = vmatpush2.msra.mxu0 0.0
      %1986 = vmatprep.subr.mxu0 0.0
      %1987 = vmatpush2.msra.mxu0 0.0
      %1988 = vmatprep.subr.mxu0 0.0
      %1989 = vmatpush2.msra.mxu0 0.0
      %1990 = vmatprep.subr.mxu0 0.0
      %1991 = vmatpush2.msra.mxu0 0.0
      %1992 = vmatprep.subr.mxu0 0.0
      %1993 = vmatpush2.msra.mxu0 0.0
      %1994 = vmatprep.subr.mxu0 0.0
      %1995 = vmatpush2.msra.mxu0 0.0
      %1996 = vmatprep.subr.mxu0 0.0
      %1997 = vmatpush2.msra.mxu0 0.0
      %1998 = vmatprep.subr.mxu0 0.0
      %1999 = vmatpush2.msra.mxu0 0.0
      %2000 = vmatprep.subr.mxu0 0.0
      %2001 = vmatpush2.msra.mxu0 0.0
      %2002 = vmatprep.subr.mxu0 0.0
      %2003 = vmatpush2.msra.mxu0 0.0
      %2004 = vmatprep.subr.mxu0 0.0
      %2005 = vmatpush2.msra.mxu0 0.0
      %2006 = vmatprep.subr.mxu0 0.0
      %2007 = vmatpush2.msra.mxu0 0.0
      %2008 = vmatprep.subr.mxu0 0.0
      %2009 = vmatpush2.msra.mxu0 0.0
      %2010 = vmatprep.subr.mxu0 0.0
      %2011 = vmatpush2.msra.mxu0 0.0
      %2012 = vmatprep.subr.mxu0 0.0
      %2013 = vmatpush2.msra.mxu0 0.0
      %2014 = vmatprep.mubr.f32.mxu0 0.0
      %2015 = vmatmul.mubr.f32.gmra.mxu0 %v1948
      %v2016 = vpop.f32.mrf.mxu0
      %v2017 = vadd.f32 0.0, %v2016
      %v2018 = vpop.f32.mrf.mxu0
      %2019 = vdwg.mxu0
      %v2021 = vsel %vm1229, %v1794, 0
      %2023 = vmatprep.subr.mxu0 0.0
      %2024 = vmatpush1.msra.mxu0 0.0
      %2025 = vmatprep.subr.mxu0 0.0
      %2026 = vmatpush1.msra.mxu0 0.0
      %2027 = vmatprep.subr.mxu0 0.0
      %2028 = vmatpush1.msra.mxu0 0.0
      %2029 = vmatprep.subr.mxu0 0.0
      %2030 = vmatpush1.msra.mxu0 0.0
      %2031 = vmatprep.subr.mxu0 0.0
      %2032 = vmatpush1.msra.mxu0 0.0
      %2033 = vmatprep.subr.mxu0 0.0
      %2034 = vmatpush1.msra.mxu0 0.0
      %2035 = vmatprep.subr.mxu0 0.0
      %2036 = vmatpush1.msra.mxu0 0.0
      %2037 = vmatprep.subr.mxu0 0.0
      %2038 = vmatpush1.msra.mxu0 0.0
      %2039 = vmatprep.subr.mxu0 0.0
      %2040 = vmatpush1.msra.mxu0 0.0
      %2041 = vmatprep.subr.mxu0 0.0
      %2042 = vmatpush1.msra.mxu0 0.0
      %2043 = vmatprep.subr.mxu0 0.0
      %2044 = vmatpush1.msra.mxu0 0.0
      %2045 = vmatprep.subr.mxu0 0.0
      %2046 = vmatpush1.msra.mxu0 0.0
      %2047 = vmatprep.subr.mxu0 0.0
      %2048 = vmatpush1.msra.mxu0 0.0
      %2049 = vmatprep.subr.mxu0 0.0
      %2050 = vmatpush1.msra.mxu0 0.0
      %2051 = vmatprep.subr.mxu0 0.0
      %2052 = vmatpush1.msra.mxu0 0.0
      %2053 = vmatprep.subr.mxu0 0.0
      %2054 = vmatpush1.msra.mxu0 %v1872
      %2055 = vmatprep.subr.mxu0 0.0
      %2056 = vmatpush2.msra.mxu0 0.0
      %2057 = vmatprep.subr.mxu0 0.0
      %2058 = vmatpush2.msra.mxu0 0.0
      %2059 = vmatprep.subr.mxu0 0.0
      %2060 = vmatpush2.msra.mxu0 0.0
      %2061 = vmatprep.subr.mxu0 0.0
      %2062 = vmatpush2.msra.mxu0 0.0
      %2063 = vmatprep.subr.mxu0 0.0
      %2064 = vmatpush2.msra.mxu0 0.0
      %2065 = vmatprep.subr.mxu0 0.0
      %2066 = vmatpush2.msra.mxu0 0.0
      %2067 = vmatprep.subr.mxu0 0.0
      %2068 = vmatpush2.msra.mxu0 0.0
      %2069 = vmatprep.subr.mxu0 0.0
      %2070 = vmatpush2.msra.mxu0 0.0
      %2071 = vmatprep.subr.mxu0 0.0
      %2072 = vmatpush2.msra.mxu0 0.0
      %2073 = vmatprep.subr.mxu0 0.0
      %2074 = vmatpush2.msra.mxu0 0.0
      %2075 = vmatprep.subr.mxu0 0.0
      %2076 = vmatpush2.msra.mxu0 0.0
      %2077 = vmatprep.subr.mxu0 0.0
      %2078 = vmatpush2.msra.mxu0 0.0
      %2079 = vmatprep.subr.mxu0 0.0
      %2080 = vmatpush2.msra.mxu0 0.0
      %2081 = vmatprep.subr.mxu0 0.0
      %2082 = vmatpush2.msra.mxu0 0.0
      %2083 = vmatprep.subr.mxu0 0.0
      %2084 = vmatpush2.msra.mxu0 0.0
      %2085 = vmatprep.subr.mxu0 0.0
      %2086 = vmatpush2.msra.mxu0 0.0
      %2087 = vmatprep.mubr.f32.mxu0 0.0
      %2088 = vmatmul.mubr.f32.gmra.mxu0 %v2021
      %v2089 = vpop.f32.mrf.mxu0
      %v2090 = vadd.f32 0.0, %v2089
      %v2091 = vpop.f32.mrf.mxu0
      %2092 = vdwg.mxu0
      %v2094 = vsel %vm1229, %v1867, 0
      %2096 = vmatprep.subr.mxu0 0.0
      %2097 = vmatpush1.msra.mxu0 0.0
      %2098 = vmatprep.subr.mxu0 0.0
      %2099 = vmatpush1.msra.mxu0 0.0
      %2100 = vmatprep.subr.mxu0 0.0
      %2101 = vmatpush1.msra.mxu0 0.0
      %2102 = vmatprep.subr.mxu0 0.0
      %2103 = vmatpush1.msra.mxu0 0.0
      %2104 = vmatprep.subr.mxu0 0.0
      %2105 = vmatpush1.msra.mxu0 0.0
      %2106 = vmatprep.subr.mxu0 0.0
      %2107 = vmatpush1.msra.mxu0 0.0
      %2108 = vmatprep.subr.mxu0 0.0
      %2109 = vmatpush1.msra.mxu0 0.0
      %2110 = vmatprep.subr.mxu0 0.0
      %2111 = vmatpush1.msra.mxu0 0.0
      %2112 = vmatprep.subr.mxu0 0.0
      %2113 = vmatpush1.msra.mxu0 0.0
      %2114 = vmatprep.subr.mxu0 0.0
      %2115 = vmatpush1.msra.mxu0 0.0
      %2116 = vmatprep.subr.mxu0 0.0
      %2117 = vmatpush1.msra.mxu0 0.0
      %2118 = vmatprep.subr.mxu0 0.0
      %2119 = vmatpush1.msra.mxu0 0.0
      %2120 = vmatprep.subr.mxu0 0.0
      %2121 = vmatpush1.msra.mxu0 0.0
      %2122 = vmatprep.subr.mxu0 0.0
      %2123 = vmatpush1.msra.mxu0 0.0
      %2124 = vmatprep.subr.mxu0 0.0
      %2125 = vmatpush1.msra.mxu0 0.0
      %2126 = vmatprep.subr.mxu0 0.0
      %2127 = vmatpush1.msra.mxu0 %v1873
      %2128 = vmatprep.subr.mxu0 0.0
      %2129 = vmatpush2.msra.mxu0 0.0
      %2130 = vmatprep.subr.mxu0 0.0
      %2131 = vmatpush2.msra.mxu0 0.0
      %2132 = vmatprep.subr.mxu0 0.0
      %2133 = vmatpush2.msra.mxu0 0.0
      %2134 = vmatprep.subr.mxu0 0.0
      %2135 = vmatpush2.msra.mxu0 0.0
      %2136 = vmatprep.subr.mxu0 0.0
      %2137 = vmatpush2.msra.mxu0 0.0
      %2138 = vmatprep.subr.mxu0 0.0
      %2139 = vmatpush2.msra.mxu0 0.0
      %2140 = vmatprep.subr.mxu0 0.0
      %2141 = vmatpush2.msra.mxu0 0.0
      %2142 = vmatprep.subr.mxu0 0.0
      %2143 = vmatpush2.msra.mxu0 0.0
      %2144 = vmatprep.subr.mxu0 0.0
      %2145 = vmatpush2.msra.mxu0 0.0
      %2146 = vmatprep.subr.mxu0 0.0
      %2147 = vmatpush2.msra.mxu0 0.0
      %2148 = vmatprep.subr.mxu0 0.0
      %2149 = vmatpush2.msra.mxu0 0.0
      %2150 = vmatprep.subr.mxu0 0.0
      %2151 = vmatpush2.msra.mxu0 0.0
      %2152 = vmatprep.subr.mxu0 0.0
      %2153 = vmatpush2.msra.mxu0 0.0
      %2154 = vmatprep.subr.mxu0 0.0
      %2155 = vmatpush2.msra.mxu0 0.0
      %2156 = vmatprep.subr.mxu0 0.0
      %2157 = vmatpush2.msra.mxu0 0.0
      %2158 = vmatprep.subr.mxu0 0.0
      %2159 = vmatpush2.msra.mxu0 0.0
      %2160 = vmatprep.mubr.f32.mxu0 0.0
      %2161 = vmatmul.mubr.f32.gmra.mxu0 %v2094
      %v2162 = vpop.f32.mrf.mxu0
      %v2163 = vadd.f32 0.0, %v2162
      %v2164 = vpop.f32.mrf.mxu0
      %2165 = vdwg.mxu0
      %v2166 = vsel %vm293, %v1944, 0.0
      %v2167 = vsel %vm293, %v2017, 0.0
      %v2168 = vadd.f32 %v2166, %v2167
      %v2169 = vsel %vm293, %v2090, 0.0
      %v2170 = vadd.f32 %v2168, %v2169
      %v2171 = vsel %vm293, %v2163, 0.0
      %v2172 = vadd.f32 %v2170, %v2171
      %v2173 = vlaneseq
      %v2174 = vshrl.u32 %v2173, 7
      %v2175 = vsub.s32 0, %v2174
      %v2176 = vrot.slane %v248, %v2175
      %v2177 = vadd.f32 %v2172, %v2176
      %v2178 = vadd.f32 %v2177, %v247
      %v2179 = vsel %vm293, %v2178, 0.0
      %2180 = vadd.xlane.f32.xlu0 %v2179
      %v2181 = vpop.xlane.xlu0 %2180
      %v2182 = vrcp.pop 32.0
      %v2183 = vmul.f32 %v2181, %v2182
      %v2184 = vsub.f32 %v2178, %v2183
      %v2185 = vmul.f32 %v2184, %v2184
      %v2186 = vsel %vm293, %v2185, 0.0
      %2187 = vadd.xlane.f32.xlu0 %v2186
      %v2188 = vpop.xlane.xlu0 %2187
      %v2189 = vmul.f32 %v2188, %v2182
      %v2190 = vadd.f32 %v2189, 1e-05
      %v2191 = vrsqrt.pop %v2190
      %v2192 = vmul.f32 %v2184, %v2191
      %v2193 = vlaneseq
      %v2194 = vshrl.u32 %v2193, 7
      %v2195 = vsub.s32 1, %v2194
      %v2196 = vrot.slane %v248, %v2195
      %v2197 = vmul.f32 %v2192, %v2196
      %v2198 = vlaneseq
      %v2199 = vshrl.u32 %v2198, 7
      %v2200 = vsub.s32 2, %v2199
      %v2201 = vrot.slane %v248, %v2200
      %v2202 = vadd.f32 %v2197, %v2201
      %v2203 = vld [vmem:[%s4] sm:$0xff]
      %v2204 = vld [vmem:[%s4 + $0x8] sm:$0xff]
      %v2205 = vld [vmem:[%s4 + $0x10] sm:$0xff]
      %v2206 = vld [vmem:[%s4 + $0x18] sm:$0xff]
      %v2207 = vlaneseq
      %v2208 = vshrl.u32 %v2207, 7
      %v2209 = vsub.s32 3, %v2208
      %v2210 = vrot.slane %v248, %v2209
      %v2212 = vsel %vm293, %v2202, 0
      %2214 = vmatprep.subr.mxu0 0.0
      %2215 = vmatpush1.msra.mxu0 0.0
      %2216 = vmatprep.subr.mxu0 0.0
      %2217 = vmatpush1.msra.mxu0 0.0
      %2218 = vmatprep.subr.mxu0 0.0
      %2219 = vmatpush1.msra.mxu0 0.0
      %2220 = vmatprep.subr.mxu0 0.0
      %2221 = vmatpush1.msra.mxu0 0.0
      %2222 = vmatprep.subr.mxu0 0.0
      %2223 = vmatpush1.msra.mxu0 0.0
      %2224 = vmatprep.subr.mxu0 0.0
      %2225 = vmatpush1.msra.mxu0 0.0
      %2226 = vmatprep.subr.mxu0 0.0
      %2227 = vmatpush1.msra.mxu0 0.0
      %2228 = vmatprep.subr.mxu0 0.0
      %2229 = vmatpush1.msra.mxu0 0.0
      %2230 = vmatprep.subr.mxu0 0.0
      %2231 = vmatpush1.msra.mxu0 0.0
      %2232 = vmatprep.subr.mxu0 0.0
      %2233 = vmatpush1.msra.mxu0 0.0
      %2234 = vmatprep.subr.mxu0 0.0
      %2235 = vmatpush1.msra.mxu0 0.0
      %2236 = vmatprep.subr.mxu0 0.0
      %2237 = vmatpush1.msra.mxu0 0.0
      %2238 = vmatprep.subr.mxu0 0.0
      %2239 = vmatpush1.msra.mxu0 %v2206
      %2240 = vmatprep.subr.mxu0 0.0
      %2241 = vmatpush1.msra.mxu0 %v2205
      %2242 = vmatprep.subr.mxu0 0.0
      %2243 = vmatpush1.msra.mxu0 %v2204
      %2244 = vmatprep.subr.mxu0 0.0
      %2245 = vmatpush1.msra.mxu0 %v2203
      %2246 = vmatprep.subr.mxu0 0.0
      %2247 = vmatpush2.msra.mxu0 0.0
      %2248 = vmatprep.subr.mxu0 0.0
      %2249 = vmatpush2.msra.mxu0 0.0
      %2250 = vmatprep.subr.mxu0 0.0
      %2251 = vmatpush2.msra.mxu0 0.0
      %2252 = vmatprep.subr.mxu0 0.0
      %2253 = vmatpush2.msra.mxu0 0.0
      %2254 = vmatprep.subr.mxu0 0.0
      %2255 = vmatpush2.msra.mxu0 0.0
      %2256 = vmatprep.subr.mxu0 0.0
      %2257 = vmatpush2.msra.mxu0 0.0
      %2258 = vmatprep.subr.mxu0 0.0
      %2259 = vmatpush2.msra.mxu0 0.0
      %2260 = vmatprep.subr.mxu0 0.0
      %2261 = vmatpush2.msra.mxu0 0.0
      %2262 = vmatprep.subr.mxu0 0.0
      %2263 = vmatpush2.msra.mxu0 0.0
      %2264 = vmatprep.subr.mxu0 0.0
      %2265 = vmatpush2.msra.mxu0 0.0
      %2266 = vmatprep.subr.mxu0 0.0
      %2267 = vmatpush2.msra.mxu0 0.0
      %2268 = vmatprep.subr.mxu0 0.0
      %2269 = vmatpush2.msra.mxu0 0.0
      %2270 = vmatprep.subr.mxu0 0.0
      %2271 = vmatpush2.msra.mxu0 0.0
      %2272 = vmatprep.subr.mxu0 0.0
      %2273 = vmatpush2.msra.mxu0 0.0
      %2274 = vmatprep.subr.mxu0 0.0
      %2275 = vmatpush2.msra.mxu0 0.0
      %2276 = vmatprep.subr.mxu0 0.0
      %2277 = vmatpush2.msra.mxu0 0.0
      %2278 = vmatprep.mubr.f32.mxu0 0.0
      %2279 = vmatmul.mubr.f32.gmra.mxu0 %v2212
      %v2280 = vpop.f32.mrf.mxu0
      %v2281 = vadd.f32 %v2210, %v2280
      %v2282 = vpop.f32.mrf.mxu0
      %2283 = vdwg.mxu0
      %v2284 = vmax.f32 %v2281, 0.0
      %s2285 = scalar_lea.vmem %s4, 32
      %v2286 = vld [vmem:[%s2285] sm:$0xff]
      %v2287 = vld [vmem:[%s2285 + $0x8] sm:$0xff]
      %v2288 = vld [vmem:[%s2285 + $0x10] sm:$0xff]
      %v2289 = vld [vmem:[%s2285 + $0x18] sm:$0xff]
      %v2290 = vlaneseq
      %v2291 = vshrl.u32 %v2290, 7
      %v2292 = vsub.s32 4, %v2291
      %v2293 = vrot.slane %v248, %v2292
      %v2295 = vsel %vm293, %v2284, 0
      %2297 = vmatprep.subr.mxu0 0.0
      %2298 = vmatpush1.msra.mxu0 0.0
      %2299 = vmatprep.subr.mxu0 0.0
      %2300 = vmatpush1.msra.mxu0 0.0
      %2301 = vmatprep.subr.mxu0 0.0
      %2302 = vmatpush1.msra.mxu0 0.0
      %2303 = vmatprep.subr.mxu0 0.0
      %2304 = vmatpush1.msra.mxu0 0.0
      %2305 = vmatprep.subr.mxu0 0.0
      %2306 = vmatpush1.msra.mxu0 0.0
      %2307 = vmatprep.subr.mxu0 0.0
      %2308 = vmatpush1.msra.mxu0 0.0
      %2309 = vmatprep.subr.mxu0 0.0
      %2310 = vmatpush1.msra.mxu0 0.0
      %2311 = vmatprep.subr.mxu0 0.0
      %2312 = vmatpush1.msra.mxu0 0.0
      %2313 = vmatprep.subr.mxu0 0.0
      %2314 = vmatpush1.msra.mxu0 0.0
      %2315 = vmatprep.subr.mxu0 0.0
      %2316 = vmatpush1.msra.mxu0 0.0
      %2317 = vmatprep.subr.mxu0 0.0
      %2318 = vmatpush1.msra.mxu0 0.0
      %2319 = vmatprep.subr.mxu0 0.0
      %2320 = vmatpush1.msra.mxu0 0.0
      %2321 = vmatprep.subr.mxu0 0.0
      %2322 = vmatpush1.msra.mxu0 %v2289
      %2323 = vmatprep.subr.mxu0 0.0
      %2324 = vmatpush1.msra.mxu0 %v2288
      %2325 = vmatprep.subr.mxu0 0.0
      %2326 = vmatpush1.msra.mxu0 %v2287
      %2327 = vmatprep.subr.mxu0 0.0
      %2328 = vmatpush1.msra.mxu0 %v2286
      %2329 = vmatprep.subr.mxu0 0.0
      %2330 = vmatpush2.msra.mxu0 0.0
      %2331 = vmatprep.subr.mxu0 0.0
      %2332 = vmatpush2.msra.mxu0 0.0
      %2333 = vmatprep.subr.mxu0 0.0
      %2334 = vmatpush2.msra.mxu0 0.0
      %2335 = vmatprep.subr.mxu0 0.0
      %2336 = vmatpush2.msra.mxu0 0.0
      %2337 = vmatprep.subr.mxu0 0.0
      %2338 = vmatpush2.msra.mxu0 0.0
      %2339 = vmatprep.subr.mxu0 0.0
      %2340 = vmatpush2.msra.mxu0 0.0
      %2341 = vmatprep.subr.mxu0 0.0
      %2342 = vmatpush2.msra.mxu0 0.0
      %2343 = vmatprep.subr.mxu0 0.0
      %2344 = vmatpush2.msra.mxu0 0.0
      %2345 = vmatprep.subr.mxu0 0.0
      %2346 = vmatpush2.msra.mxu0 0.0
      %2347 = vmatprep.subr.mxu0 0.0
      %2348 = vmatpush2.msra.mxu0 0.0
      %2349 = vmatprep.subr.mxu0 0.0
      %2350 = vmatpush2.msra.mxu0 0.0
      %2351 = vmatprep.subr.mxu0 0.0
      %2352 = vmatpush2.msra.mxu0 0.0
      %2353 = vmatprep.subr.mxu0 0.0
      %2354 = vmatpush2.msra.mxu0 0.0
      %2355 = vmatprep.subr.mxu0 0.0
      %2356 = vmatpush2.msra.mxu0 0.0
      %2357 = vmatprep.subr.mxu0 0.0
      %2358 = vmatpush2.msra.mxu0 0.0
      %2359 = vmatprep.subr.mxu0 0.0
      %2360 = vmatpush2.msra.mxu0 0.0
      %2361 = vmatprep.mubr.f32.mxu0 0.0
      %2362 = vmatmul.mubr.f32.gmra.mxu0 %v2295
      %v2363 = vpop.f32.mrf.mxu0
      %v2364 = vadd.f32 %v2293, %v2363
      %v2365 = vpop.f32.mrf.mxu0
      %2366 = vdwg.mxu0
      %v2367 = vadd.f32 %v247, %v2364
      %v2368 = vsel %vm293, %v2367, 0.0
      %2369 = vadd.xlane.f32.xlu0 %v2368
      %v2370 = vpop.xlane.xlu0 %2369
      %v2371 = vmul.f32 %v2370, %v2182
      %v2372 = vsub.f32 %v2367, %v2371
      %v2373 = vmul.f32 %v2372, %v2372
      %v2374 = vsel %vm293, %v2373, 0.0
      %2375 = vadd.xlane.f32.xlu0 %v2374
      %v2376 = vpop.xlane.xlu0 %2375
      %v2377 = vmul.f32 %v2376, %v2182
      %v2378 = vadd.f32 %v2377, 1e-05
      %v2379 = vrsqrt.pop %v2378
      %v2380 = vmul.f32 %v2372, %v2379
      %v2381 = vlaneseq
      %v2382 = vshrl.u32 %v2381, 7
      %v2383 = vsub.s32 5, %v2382
      %v2384 = vrot.slane %v248, %v2383
      %v2385 = vmul.f32 %v2380, %v2384
      %v2386 = vlaneseq
      %v2387 = vshrl.u32 %v2386, 7
      %v2388 = vsub.s32 6, %v2387
      %v2389 = vrot.slane %v248, %v2388
      %v2390 = vadd.f32 %v2385, %v2389
      %2391 = vst.msk [vmem:[%s246] sm:$0xff] %vm293, %v2390
      %p2392 = scmp.lt.s32.totalorder %s17, 1
      %s2393 = scalar_select %p2392, %s17, 1
      %s2394 = smul.addr %s2393, 8
      %s2395 = scalar_lea.vmem %s6, %s2394
      // Predicated region
      $region45: #{transformer_layer.1} parent=43 // pred_check
        %p2396 = pneg %p166
      $region46: #{transformer_layer.1} parent=43 // pred_check_branch
        %2398 = sbr.rel (%p2396) target = $region48
      $region47: #{transformer_layer.1} parent=43 // pred_region
        _
      $region48: #{transformer_layer.1} parent=43 // pred_fallthru
        _
    $region44: #{transformer_layer.1} parent=5 // pred_fallthru
      _
    %p2399 = scmp.le.s32.totalorder 2, %s12
    // Predicated region
    $region49: #{transformer_layer.1} parent=5 // pred_check
      %p2400 = pneg %p2399
    $region50: #{transformer_layer.1} parent=5 // pred_check_branch
      %2402 = sbr.rel (%p2400) target = $region52
    $region51: #{transformer_layer.1} parent=5 // pred_region
      %s2403 = ssub.s32 %s12, 2
      // Predicated region
      $region53: #{transformer_layer.1} parent=51 // pred_check
        %p2404 = pneg %p172
      $region54: #{transformer_layer.1} parent=51 // pred_check_branch
        %2406 = sbr.rel (%p2404) target = $region56
      $region55: #{transformer_layer.1} parent=51 // pred_region
        %p2407 = scmp.lt.s32.totalorder %s18, 1
        %s2408 = scalar_select %p2407, %s18, 1
        %s2409 = smul.addr %s2408, 8
        %s2410 = scalar_lea.vmem %s6, %s2409
      $region56: #{transformer_layer.1} parent=51 // pred_fallthru
        _
    $region52: #{transformer_layer.1} parent=5 // pred_fallthru
      _
  $region6: #{transformer_layer.1} parent=0 // loop_footer
    %s16 = sadd.s32 1, %s12
  $region7: #{transformer_layer.1} parent=0 // loop_footer_branch
    %11 = sbr.rel target = $region3
  $region8: #{transformer_layer.1} parent=0 // loop_exit
    _

</llo_original>
